<compile_context>
chip_gen: v7x
topology: tpu7x:2x2x1
jax: 0.10.0
libtpu: 0.0.40
codegen_flags: <defaults>
</compile_context>

<pallas_src>
import functools

import jax
import jax.numpy as jnp
from jax import lax
from jax.experimental import pallas as pl
from jax.experimental.pallas import tpu as pltpu


# ---------------------------------------------------------------------------
# Fused kernel
# ---------------------------------------------------------------------------

def _bottleneck_fused_kernel(xp_ref, xm_ref, xn_ref,
                             w1_ref, b1_ref, w2_ref, b2_ref, w3_ref, b3_ref,
                             o_ref, slab_ref, *, nine_tap):
    # xp_ref: (1, 1, W, Cin) bf16  halo row above (clamped at the top edge)
    # xm_ref: (1, T, W, Cin) bf16  main row tile
    # xn_ref: (1, 1, W, Cin) bf16  halo row below (clamped at the bottom edge)
    # w1_ref: (Cin, C)  bf16 (BN1 scale folded)      b1_ref: (1, C)    f32
    # w2_ref: (9C, C)   bf16 if nine_tap else (3, 3C, C)  b2_ref: (1, C) f32
    # w3_ref: (C, Cout) bf16 (folded)                b3_ref: (1, Cout) f32
    # o_ref : (1, T, W, Cout) bf16
    # slab_ref: VMEM (T+2, W, 3C) bf16 scratch (kx-packed conv1 output)
    T = xm_ref.shape[1]
    W = xm_ref.shape[2]
    Cin = xm_ref.shape[3]
    C = w1_ref.shape[1]
    Cout = w3_ref.shape[1]
    f32 = jnp.float32

    t = pl.program_id(1)
    t_last = pl.num_programs(1) - 1

    # Column-edge masks for the conv2 zero padding along W (built once).
    col = lax.broadcasted_iota(jnp.int32, (1, W, 1), 1)
    first_col = col == 0
    last_col = col == (W - 1)

    def conv1_pack(x):
        # x: (rows, W, Cin) bf16 -> (rows, W, 3C) bf16  [kx=0 | kx=1 | kx=2]
        rows = x.shape[0]
        h = jnp.dot(x.reshape(rows * W, Cin), w1_ref[...],
                    preferred_element_type=f32)
        h = jnp.maximum(h + b1_ref[...], 0.0).reshape(rows, W, C)       # f32
        # kx shifts via XLU roll; wrapped edge columns are conv padding -> 0.
        left = jnp.where(first_col, 0.0, pltpu.roll(h, shift=1, axis=1))
        right = jnp.where(last_col, 0.0, pltpu.roll(h, shift=W - 1, axis=1))
        # single cast to bf16, single contiguous (rows, W, 3C) value
        return jnp.concatenate([left, h, right], axis=-1).astype(jnp.bfloat16)

    # ---- conv1 (1x1) + bn1 + relu, written straight into the slab ----------
    slab_ref[1:T + 1, :, :] = conv1_pack(xm_ref[0])        # main rows -> 1..T

    @pl.when(t == 0)                     # top halo row is conv2 zero padding
    def _():
        slab_ref[0:1, :, :] = jnp.zeros((1, W, 3 * C), jnp.bfloat16)

    @pl.when(t != 0)                     # otherwise: conv1 on the halo row
    def _():
        slab_ref[0:1, :, :] = conv1_pack(xp_ref[0])

    @pl.when(t == t_last)                # bottom halo row is zero padding
    def _():
        slab_ref[T + 1:T + 2, :, :] = jnp.zeros((1, W, 3 * C), jnp.bfloat16)

    @pl.when(t != t_last)
    def _():
        slab_ref[T + 1:T + 2, :, :] = conv1_pack(xn_ref[0])

    # ---- conv2 (3x3) + bn2 + relu ------------------------------------------
    if nine_tap:
        # One MXU pass: K = 9C.  (Chosen statically for small C.)
        a = jnp.concatenate(
            [slab_ref[0:T, :, :], slab_ref[1:T + 1, :, :], slab_ref[2:T + 2, :, :]],
            axis=-1).reshape(T * W, 9 * C)
        acc = jnp.dot(a, w2_ref[...], preferred_element_type=f32)
    else:
        # 3 matmuls over ky; operands are cheap leading-axis slab views.
        acc = jnp.zeros((T * W, C), f32)
        for ky in range(3):
            a = slab_ref[ky:ky + T, :, :].reshape(T * W, 3 * C)
            acc = acc + jnp.dot(a, w2_ref[ky],
                                preferred_element_type=f32)
    h2 = jnp.maximum(acc + b2_ref[...], 0.0)                             # f32

    # ---- conv3 (1x1) + bn3 + residual add + relu ----------------------------
    h3 = jnp.dot(h2.astype(jnp.bfloat16), w3_ref[...],
                 preferred_element_type=f32) + b3_ref[...]
    identity = xm_ref[0].reshape(T * W, Cin).astype(f32)
    out = jnp.maximum(h3 + identity, 0.0)
    o_ref[...] = out.reshape(1, T, W, Cout).astype(o_ref.dtype)


# ---------------------------------------------------------------------------
# Wrapper
# ---------------------------------------------------------------------------

def _vmem_limit_bytes():
    # ~3/4 of physical VMEM, capped at 96 MiB: 96 MiB on v5e/v6e (128 MiB),
    # 48 MiB on v7x (64 MiB).  Conservative 48 MiB if the query is unavailable.
    try:
        cap = int(pltpu.get_tpu_info().vmem_capacity_bytes)
    except Exception:
        return 48 * 1024 * 1024
    return min(96 * 1024 * 1024, (cap * 3) // 4)


def _pick_tile_h(H, tile_h):
    th = max(1, min(tile_h, H))
    while H % th:                       # largest divisor of H that is <= tile_h
        th -= 1
    # TODO(synk): proper fix for prime/odd H is ragged tail masking; for
    # moderate H just take the whole height instead of degrading to tiny tiles.
    if th * 2 < min(tile_h, H) and H <= 4 * tile_h:
        th = H
    return th


def bottleneck_forward_nhwc(x_nhwc, params, *, tile_h=32):
    """Fused Bottleneck forward.  x_nhwc: (N, H, W, inplanes), NHWC (any float
    dtype, cast to bf16); returns NHWC bf16.  inplanes == 4 * planes."""
    N, H, W, Cin = x_nhwc.shape
    C = params["w1"].shape[1]
    Cout = params["w3"].shape[1]
    assert Cin == Cout, "downsample=None requires inplanes == planes * expansion"

    th = _pick_tile_h(H, tile_h)
    nine_tap = C <= 64                  # single K=9C matmul for small widths

    x = x_nhwc.astype(jnp.bfloat16)

    # Fold BN scales into conv weights (bf16); keep biases in f32.
    # (In a full network, fold once at parameter-load time, not per call.)
    w1f = (params["w1"] * params["s1"]).astype(jnp.bfloat16)            # (Cin, C)
    w2f = (params["w2"] * params["s2"][0]).astype(jnp.bfloat16)         # (3,3,C,C) HWIO
    w2p = w2f.reshape(9 * C, C) if nine_tap else w2f.reshape(3, 3 * C, C)
    w3f = (params["w3"] * params["s3"]).astype(jnp.bfloat16)            # (C, Cout)
    b1, b2, b3 = params["b1"], params["b2"], params["b3"]

    w2_spec = (pl.BlockSpec((9 * C, C), lambda n, t: (0, 0)) if nine_tap
               else pl.BlockSpec((3, 3 * C, C), lambda n, t: (0, 0, 0)))

    kernel = functools.partial(_bottleneck_fused_kernel, nine_tap=nine_tap)

    # TODO(synk): on v7x at real widths, consider pl.Buffered(1) pipeline_mode
    #             on the constant-index weight specs to halve their VMEM.
    out_nhwc = pl.pallas_call(
        kernel,
        out_shape=jax.ShapeDtypeStruct((N, H, W, Cout), jnp.bfloat16),
        grid=(N, H // th),
        in_specs=[
            # halo row above (clamped at the top edge; zeroed in-kernel at t==0)
            pl.BlockSpec((1, 1, W, Cin),
                         lambda n, t: (n, jnp.maximum(t * th - 1, 0), 0, 0)),
            # main tile rows
            pl.BlockSpec((1, th, W, Cin), lambda n, t: (n, t, 0, 0)),
            # halo row below (clamped at the bottom edge; zeroed at t==last)
            pl.BlockSpec((1, 1, W, Cin),
                         lambda n, t: (n, jnp.minimum((t + 1) * th, H - 1), 0, 0)),
            pl.BlockSpec((Cin, C), lambda n, t: (0, 0)),                # w1 (folded)
            pl.BlockSpec((1, C), lambda n, t: (0, 0)),                  # b1
            w2_spec,                                                    # w2 (packed)
            pl.BlockSpec((1, C), lambda n, t: (0, 0)),                  # b2
            pl.BlockSpec((C, Cout), lambda n, t: (0, 0)),               # w3 (folded)
            pl.BlockSpec((1, Cout), lambda n, t: (0, 0)),               # b3
        ],
        out_specs=pl.BlockSpec((1, th, W, Cout), lambda n, t: (n, t, 0, 0)),
        scratch_shapes=[pltpu.VMEM((th + 2, W, 3 * C), jnp.bfloat16)],
        compiler_params=pltpu.CompilerParams(
            dimension_semantics=("parallel", "parallel"),
            vmem_limit_bytes=_vmem_limit_bytes()),
    )(x, x, x, w1f, b1, w2p, b2, w3f, b3)

    return out_nhwc


def bottleneck_forward(x_nchw, params, *, tile_h=32):
    """PyTorch-module-facing NCHW wrapper (layout glue only; in a real network
    keep activations NHWC/bf16 and call bottleneck_forward_nhwc directly)."""
    x_nhwc = jnp.transpose(x_nchw, (0, 2, 3, 1))
    out = bottleneck_forward_nhwc(x_nhwc, params, tile_h=tile_h)
    return jnp.transpose(out, (0, 3, 1, 2))        # NHWC -> NCHW, bf16


# ---------------------------------------------------------------------------
# Parameter construction + references
# ---------------------------------------------------------------------------

def fold_bn(gamma, beta, mean, var, eps=1e-5):
    scale = gamma / jnp.sqrt(var + eps)
    bias = beta - mean * scale
    return scale[None, :].astype(jnp.float32), bias[None, :].astype(jnp.float32)


def make_bn_params(c, salt):
    i = jnp.arange(c, dtype=jnp.float32)
    gamma = 1.0 + 0.05 * jnp.cos(i + salt)
    beta = 0.02 * jnp.sin(i * 0.7 + salt)
    mean = 0.01 * (i - c / 2.0)
    var = 1.0 + 0.1 * jnp.abs(jnp.sin(i + 2.0 * salt))
    return fold_bn(gamma, beta, mean, var)


def make_params(key, inplanes, planes):
    expansion = 4
    k1, k2, k3 = jax.random.split(key, 3)
    w1 = 0.1 * jax.random.normal(k1, (inplanes, planes), jnp.float32)            # 1x1
    w2 = 0.1 * jax.random.normal(k2, (3, 3, planes, planes), jnp.float32)        # 3x3 HWIO
    w3 = 0.1 * jax.random.normal(k3, (planes, planes * expansion), jnp.float32)  # 1x1
    s1, b1 = make_bn_params(planes, 1.0)
    s2, b2 = make_bn_params(planes, 2.0)
    s3, b3 = make_bn_params(planes * expansion, 3.0)
    return dict(w1=w1, w2=w2, w3=w3, s1=s1, b1=b1, s2=s2, b2=b2, s3=s3, b3=b3)


def bottleneck_reference_f32(x_nchw, p):
    """Pure-f32 module semantics (conv -> BN(inference) -> ReLU ... + identity)."""
    x = jnp.transpose(x_nchw, (0, 2, 3, 1))
    bn = lambda t, s, b: t * s[0] + b[0]
    out = jax.nn.relu(bn(jnp.einsum("nhwc,cd->nhwd", x, p["w1"]), p["s1"], p["b1"]))
    out = lax.conv_general_dilated(out, p["w2"], (1, 1), "SAME",
                                   dimension_numbers=("NHWC", "HWIO", "NHWC"))
    out = jax.nn.relu(bn(out, p["s2"], p["b2"]))
    out = bn(jnp.einsum("nhwc,cd->nhwd", out, p["w3"]), p["s3"], p["b3"])
    return jnp.transpose(jax.nn.relu(out + x), (0, 3, 1, 2))


def bottleneck_reference_bf16(x_nchw, p):
    """Mimics the kernel's quantization: bf16 inputs/weights/intermediates,
    f32 accumulation, bf16 output."""
    f32 = jnp.float32
    x = jnp.transpose(x_nchw, (0, 2, 3, 1)).astype(jnp.bfloat16)
    w1f = (p["w1"] * p["s1"]).astype(jnp.bfloat16)
    w2f = (p["w2"] * p["s2"][0]).astype(jnp.bfloat16)
    w3f = (p["w3"] * p["s3"]).astype(jnp.bfloat16)
    h1 = jax.nn.relu(jnp.einsum("nhwc,cd->nhwd", x, w1f,
                                preferred_element_type=f32) + p["b1"][0])
    h1 = h1.astype(jnp.bfloat16)
    h2 = lax.conv_general_dilated(h1, w2f, (1, 1), "SAME",
                                  dimension_numbers=("NHWC", "HWIO", "NHWC"),
                                  preferred_element_type=f32) + p["b2"][0]
    h2 = jax.nn.relu(h2).astype(jnp.bfloat16)
    h3 = jnp.einsum("nhwc,cd->nhwd", h2, w3f, preferred_element_type=f32) + p["b3"][0]
    out = jax.nn.relu(h3 + x.astype(f32)).astype(jnp.bfloat16)
    return jnp.transpose(out, (0, 3, 1, 2))


# ---------------------------------------------------------------------------
# Main
# ---------------------------------------------------------------------------

if __name__ == "__main__":
    planes = 8
    inplanes = planes * 4           # downsample=None -> identity must match conv3 output
    N, H, W = 2, 16, 16

    key = jax.random.PRNGKey(0)
    kx_, kp_ = jax.random.split(key)
    x = jax.random.normal(kx_, (N, inplanes, H, W), jnp.float32)   # PyTorch NCHW input
    params = make_params(kp_, inplanes, planes)

    ref_q = bottleneck_reference_bf16(x, params).astype(jnp.float32)
    ref_f = bottleneck_reference_f32(x, params)

    # tile_h=8 exercises the cross-tile halo path; tile_h=32 -> full-height tiles.
    for th in (8, 32):
        fwd = jax.jit(functools.partial(bottleneck_forward, tile_h=th))
        out = jax.block_until_ready(fwd(x, params))
        assert out.shape == (N, planes * 4, H, W), out.shape
        out_f = out.astype(jnp.float32)

        # Strict check vs. a reference with matching bf16-in / f32-acc / bf16-out.
        err_q = float(jnp.max(jnp.abs(out_f - ref_q)))
        assert jnp.allclose(out_f, ref_q, atol=3e-2, rtol=3e-2), (th, err_q)

        # Sanity check vs. pure-f32 module semantics (bf16 quantization tolerance).
        err_f = float(jnp.max(jnp.abs(out_f - ref_f)))
        assert jnp.allclose(out_f, ref_f, atol=2e-1, rtol=1e-1), (th, err_f)

    print("KERNEL_OK")
</pallas_src>

<mosaic_0001>
module attributes {stable_mosaic.version = 11 : i64} {
  func.func @_bottleneck_fused_kernel(%arg0: i32, %arg1: i32, %arg2: memref<1x1x16x32xbf16, #tpu.memory_space<vmem>>, %arg3: memref<1x8x16x32xbf16, #tpu.memory_space<vmem>>, %arg4: memref<1x1x16x32xbf16, #tpu.memory_space<vmem>>, %arg5: memref<32x8xbf16, #tpu.memory_space<vmem>>, %arg6: memref<1x8xf32, #tpu.memory_space<vmem>>, %arg7: memref<72x8xbf16, #tpu.memory_space<vmem>>, %arg8: memref<1x8xf32, #tpu.memory_space<vmem>>, %arg9: memref<8x32xbf16, #tpu.memory_space<vmem>>, %arg10: memref<1x32xf32, #tpu.memory_space<vmem>>, %arg11: memref<1x8x16x32xbf16, #tpu.memory_space<vmem>>, %arg12: memref<10x16x24xbf16, #tpu.memory_space<vmem>>) attributes {dimension_semantics = [#tpu.dimension_semantics<parallel>, #tpu.dimension_semantics<parallel>], iteration_bounds = array<i64: 2, 2>, scalar_prefetch = 0 : i64, scratch_operands = 1 : i64, tpu.core_type = #tpu.core_type<tc>, window_params = [{transform_indices = @transform_0, window_bounds = array<i64: 1, 1, 16, 32>}, {transform_indices = @transform_1, window_bounds = array<i64: 1, 8, 16, 32>}, {transform_indices = @transform_2, window_bounds = array<i64: 1, 1, 16, 32>}, {pipeline_mode = #tpu.pipeline_mode<synchronous>, transform_indices = @transform_3, window_bounds = array<i64: 32, 8>}, {pipeline_mode = #tpu.pipeline_mode<synchronous>, transform_indices = @transform_4, window_bounds = array<i64: 1, 8>}, {pipeline_mode = #tpu.pipeline_mode<synchronous>, transform_indices = @transform_5, window_bounds = array<i64: 72, 8>}, {pipeline_mode = #tpu.pipeline_mode<synchronous>, transform_indices = @transform_6, window_bounds = array<i64: 1, 8>}, {pipeline_mode = #tpu.pipeline_mode<synchronous>, transform_indices = @transform_7, window_bounds = array<i64: 8, 32>}, {pipeline_mode = #tpu.pipeline_mode<synchronous>, transform_indices = @transform_8, window_bounds = array<i64: 1, 32>}, {transform_indices = @transform_9, window_bounds = array<i64: 1, 8, 16, 32>}]} {
    %0 = tpu.iota {dimensions = array<i32: 1>} : vector<1x16x1xi32>
    %c0_i32 = arith.constant 0 : i32
    %1 = vector.broadcast %c0_i32 : i32 to vector<1x16x1xi32>
    %2 = arith.cmpi eq, %0, %1 : vector<1x16x1xi32>
    %c15_i32 = arith.constant 15 : i32
    %3 = vector.broadcast %c15_i32 : i32 to vector<1x16x1xi32>
    %4 = arith.cmpi eq, %0, %3 : vector<1x16x1xi32>
    %c0 = arith.constant 0 : index
    %c0_0 = arith.constant 0 : index
    %c0_1 = arith.constant 0 : index
    %c0_2 = arith.constant 0 : index
    %5 = vector.load %arg3[%c0, %c0_0, %c0_1, %c0_2] : memref<1x8x16x32xbf16, #tpu.memory_space<vmem>>, vector<1x8x16x32xbf16>
    %6 = vector.shape_cast %5 : vector<1x8x16x32xbf16> to vector<8x16x32xbf16>
    %7 = vector.shape_cast %6 : vector<8x16x32xbf16> to vector<128x32xbf16>
    %c0_3 = arith.constant 0 : index
    %c0_4 = arith.constant 0 : index
    %8 = vector.load %arg5[%c0_3, %c0_4] : memref<32x8xbf16, #tpu.memory_space<vmem>>, vector<32x8xbf16>
    %cst = arith.constant dense<0.000000e+00> : vector<128x8xf32>
    %9 = tpu.matmul %7, %8, %cst {dimension_numbers = #tpu.dot_dimension_numbers<[1], [0], [0], [1], [0, 0, 1, 1], [], []>} : vector<128x32xbf16>, vector<32x8xbf16>, vector<128x8xf32> -> vector<128x8xf32>
    %c0_5 = arith.constant 0 : index
    %c0_6 = arith.constant 0 : index
    %10 = vector.load %arg6[%c0_5, %c0_6] : memref<1x8xf32, #tpu.memory_space<vmem>>, vector<1x8xf32>
    %11 = vector.broadcast %10 : vector<1x8xf32> to vector<128x8xf32>
    %12 = arith.addf %9, %11 : vector<128x8xf32>
    %cst_7 = arith.constant 0.000000e+00 : f32
    %13 = vector.broadcast %cst_7 : f32 to vector<128x8xf32>
    %14 = arith.maximumf %12, %13 : vector<128x8xf32>
    %15 = vector.shape_cast %14 : vector<128x8xf32> to vector<8x16x8xf32>
    %c1_i32 = arith.constant 1 : i32
    %16 = tpu.dynamic_rotate %15 by %c1_i32 dim 1 : vector<8x16x8xf32>, i32 -> vector<8x16x8xf32>
    %cst_8 = arith.constant 0.000000e+00 : f32
    %17 = vector.shape_cast %2 : vector<1x16x1xi1> to vector<1x16x1xi1>
    %18 = vector.broadcast %17 : vector<1x16x1xi1> to vector<8x16x8xi1>
    %19 = vector.broadcast %cst_8 : f32 to vector<8x16x8xf32>
    %20 = arith.select %18, %19, %16 : vector<8x16x8xi1>, vector<8x16x8xf32>
    %c15_i32_9 = arith.constant 15 : i32
    %21 = tpu.dynamic_rotate %15 by %c15_i32_9 dim 1 : vector<8x16x8xf32>, i32 -> vector<8x16x8xf32>
    %cst_10 = arith.constant 0.000000e+00 : f32
    %22 = vector.shape_cast %4 : vector<1x16x1xi1> to vector<1x16x1xi1>
    %23 = vector.broadcast %22 : vector<1x16x1xi1> to vector<8x16x8xi1>
    %24 = vector.broadcast %cst_10 : f32 to vector<8x16x8xf32>
    %25 = arith.select %23, %24, %21 : vector<8x16x8xi1>, vector<8x16x8xf32>
    %26 = tpu.concatenate %20, %15, %25 in 2 : vector<8x16x8xf32>, vector<8x16x8xf32>, vector<8x16x8xf32> -> vector<8x16x24xf32>
    %27 = arith.truncf %26 : vector<8x16x24xf32> to vector<8x16x24xbf16>
    %c1 = arith.constant 1 : index
    %c0_11 = arith.constant 0 : index
    %c0_12 = arith.constant 0 : index
    %28 = vector.load %arg12[%c1, %c0_11, %c0_12] : memref<10x16x24xbf16, #tpu.memory_space<vmem>>, vector<8x16x24xbf16>
    tpu.vector_store %arg12[%c1, %c0_11, %c0_12], %27 {strides = array<i32>} : memref<10x16x24xbf16, #tpu.memory_space<vmem>>, vector<8x16x24xbf16>,
    %c0_i32_13 = arith.constant 0 : i32
    %29 = arith.cmpi eq, %arg1, %c0_i32_13 : i32
    %30 = arith.extui %29 : i1 to i32
    %c0_i32_14 = arith.constant 0 : i32
    %31 = arith.cmpi ne, %30, %c0_i32_14 : i32
    scf.if %31 {
      %cst_49 = arith.constant 0.000000e+00 : bf16
      %69 = vector.broadcast %cst_49 : bf16 to vector<1x16x24xbf16>
      %c0_50 = arith.constant 0 : index
      %c0_51 = arith.constant 0 : index
      %c0_52 = arith.constant 0 : index
      %70 = vector.load %arg12[%c0_50, %c0_51, %c0_52] : memref<10x16x24xbf16, #tpu.memory_space<vmem>>, vector<1x16x24xbf16>
      tpu.vector_store %arg12[%c0_50, %c0_51, %c0_52], %69 {strides = array<i32>} : memref<10x16x24xbf16, #tpu.memory_space<vmem>>, vector<1x16x24xbf16>,
    } else {
    }
    %c0_i32_15 = arith.constant 0 : i32
    %32 = arith.cmpi ne, %arg1, %c0_i32_15 : i32
    %33 = arith.extui %32 : i1 to i32
    %c0_i32_16 = arith.constant 0 : i32
    %34 = arith.cmpi ne, %33, %c0_i32_16 : i32
    scf.if %34 {
      %c0_49 = arith.constant 0 : index
      %c0_50 = arith.constant 0 : index
      %c0_51 = arith.constant 0 : index
      %c0_52 = arith.constant 0 : index
      %69 = vector.load %arg2[%c0_49, %c0_50, %c0_51, %c0_52] : memref<1x1x16x32xbf16, #tpu.memory_space<vmem>>, vector<1x1x16x32xbf16>
      %70 = vector.shape_cast %69 : vector<1x1x16x32xbf16> to vector<1x16x32xbf16>
      %71 = vector.shape_cast %70 : vector<1x16x32xbf16> to vector<16x32xbf16>
      %c0_53 = arith.constant 0 : index
      %c0_54 = arith.constant 0 : index
      %72 = vector.load %arg5[%c0_53, %c0_54] : memref<32x8xbf16, #tpu.memory_space<vmem>>, vector<32x8xbf16>
      %cst_55 = arith.constant dense<0.000000e+00> : vector<16x8xf32>
      %73 = tpu.matmul %71, %72, %cst_55 {dimension_numbers = #tpu.dot_dimension_numbers<[1], [0], [0], [1], [0, 0, 1, 1], [], []>} : vector<16x32xbf16>, vector<32x8xbf16>, vector<16x8xf32> -> vector<16x8xf32>
      %c0_56 = arith.constant 0 : index
      %c0_57 = arith.constant 0 : index
      %74 = vector.load %arg6[%c0_56, %c0_57] : memref<1x8xf32, #tpu.memory_space<vmem>>, vector<1x8xf32>
      %75 = vector.broadcast %74 : vector<1x8xf32> to vector<16x8xf32>
      %76 = arith.addf %73, %75 : vector<16x8xf32>
      %cst_58 = arith.constant 0.000000e+00 : f32
      %77 = vector.broadcast %cst_58 : f32 to vector<16x8xf32>
      %78 = arith.maximumf %76, %77 : vector<16x8xf32>
      %79 = vector.shape_cast %78 : vector<16x8xf32> to vector<1x16x8xf32>
      %c1_i32_59 = arith.constant 1 : i32
      %80 = tpu.dynamic_rotate %79 by %c1_i32_59 dim 1 : vector<1x16x8xf32>, i32 -> vector<1x16x8xf32>
      %cst_60 = arith.constant 0.000000e+00 : f32
      %81 = vector.shape_cast %2 : vector<1x16x1xi1> to vector<1x16x1xi1>
      %82 = vector.broadcast %81 : vector<1x16x1xi1> to vector<1x16x8xi1>
      %83 = vector.broadcast %cst_60 : f32 to vector<1x16x8xf32>
      %84 = arith.select %82, %83, %80 : vector<1x16x8xi1>, vector<1x16x8xf32>
      %c15_i32_61 = arith.constant 15 : i32
      %85 = tpu.dynamic_rotate %79 by %c15_i32_61 dim 1 : vector<1x16x8xf32>, i32 -> vector<1x16x8xf32>
      %cst_62 = arith.constant 0.000000e+00 : f32
      %86 = vector.shape_cast %4 : vector<1x16x1xi1> to vector<1x16x1xi1>
      %87 = vector.broadcast %86 : vector<1x16x1xi1> to vector<1x16x8xi1>
      %88 = vector.broadcast %cst_62 : f32 to vector<1x16x8xf32>
      %89 = arith.select %87, %88, %85 : vector<1x16x8xi1>, vector<1x16x8xf32>
      %90 = tpu.concatenate %84, %79, %89 in 2 : vector<1x16x8xf32>, vector<1x16x8xf32>, vector<1x16x8xf32> -> vector<1x16x24xf32>
      %91 = arith.truncf %90 : vector<1x16x24xf32> to vector<1x16x24xbf16>
      %c0_63 = arith.constant 0 : index
      %c0_64 = arith.constant 0 : index
      %c0_65 = arith.constant 0 : index
      %92 = vector.load %arg12[%c0_63, %c0_64, %c0_65] : memref<10x16x24xbf16, #tpu.memory_space<vmem>>, vector<1x16x24xbf16>
      tpu.vector_store %arg12[%c0_63, %c0_64, %c0_65], %91 {strides = array<i32>} : memref<10x16x24xbf16, #tpu.memory_space<vmem>>, vector<1x16x24xbf16>,
    } else {
    }
    %c1_i32_17 = arith.constant 1 : i32
    %35 = arith.cmpi eq, %arg1, %c1_i32_17 : i32
    %36 = arith.extui %35 : i1 to i32
    %c0_i32_18 = arith.constant 0 : i32
    %37 = arith.cmpi ne, %36, %c0_i32_18 : i32
    scf.if %37 {
      %cst_49 = arith.constant 0.000000e+00 : bf16
      %69 = vector.broadcast %cst_49 : bf16 to vector<1x16x24xbf16>
      %c9 = arith.constant 9 : index
      %c0_50 = arith.constant 0 : index
      %c0_51 = arith.constant 0 : index
      %70 = vector.load %arg12[%c9, %c0_50, %c0_51] : memref<10x16x24xbf16, #tpu.memory_space<vmem>>, vector<1x16x24xbf16>
      tpu.vector_store %arg12[%c9, %c0_50, %c0_51], %69 {strides = array<i32>} : memref<10x16x24xbf16, #tpu.memory_space<vmem>>, vector<1x16x24xbf16>,
    } else {
    }
    %c1_i32_19 = arith.constant 1 : i32
    %38 = arith.cmpi ne, %arg1, %c1_i32_19 : i32
    %39 = arith.extui %38 : i1 to i32
    %c0_i32_20 = arith.constant 0 : i32
    %40 = arith.cmpi ne, %39, %c0_i32_20 : i32
    scf.if %40 {
      %c0_49 = arith.constant 0 : index
      %c0_50 = arith.constant 0 : index
      %c0_51 = arith.constant 0 : index
      %c0_52 = arith.constant 0 : index
      %69 = vector.load %arg4[%c0_49, %c0_50, %c0_51, %c0_52] : memref<1x1x16x32xbf16, #tpu.memory_space<vmem>>, vector<1x1x16x32xbf16>
      %70 = vector.shape_cast %69 : vector<1x1x16x32xbf16> to vector<1x16x32xbf16>
      %71 = vector.shape_cast %70 : vector<1x16x32xbf16> to vector<16x32xbf16>
      %c0_53 = arith.constant 0 : index
      %c0_54 = arith.constant 0 : index
      %72 = vector.load %arg5[%c0_53, %c0_54] : memref<32x8xbf16, #tpu.memory_space<vmem>>, vector<32x8xbf16>
      %cst_55 = arith.constant dense<0.000000e+00> : vector<16x8xf32>
      %73 = tpu.matmul %71, %72, %cst_55 {dimension_numbers = #tpu.dot_dimension_numbers<[1], [0], [0], [1], [0, 0, 1, 1], [], []>} : vector<16x32xbf16>, vector<32x8xbf16>, vector<16x8xf32> -> vector<16x8xf32>
      %c0_56 = arith.constant 0 : index
      %c0_57 = arith.constant 0 : index
      %74 = vector.load %arg6[%c0_56, %c0_57] : memref<1x8xf32, #tpu.memory_space<vmem>>, vector<1x8xf32>
      %75 = vector.broadcast %74 : vector<1x8xf32> to vector<16x8xf32>
      %76 = arith.addf %73, %75 : vector<16x8xf32>
      %cst_58 = arith.constant 0.000000e+00 : f32
      %77 = vector.broadcast %cst_58 : f32 to vector<16x8xf32>
      %78 = arith.maximumf %76, %77 : vector<16x8xf32>
      %79 = vector.shape_cast %78 : vector<16x8xf32> to vector<1x16x8xf32>
      %c1_i32_59 = arith.constant 1 : i32
      %80 = tpu.dynamic_rotate %79 by %c1_i32_59 dim 1 : vector<1x16x8xf32>, i32 -> vector<1x16x8xf32>
      %cst_60 = arith.constant 0.000000e+00 : f32
      %81 = vector.shape_cast %2 : vector<1x16x1xi1> to vector<1x16x1xi1>
      %82 = vector.broadcast %81 : vector<1x16x1xi1> to vector<1x16x8xi1>
      %83 = vector.broadcast %cst_60 : f32 to vector<1x16x8xf32>
      %84 = arith.select %82, %83, %80 : vector<1x16x8xi1>, vector<1x16x8xf32>
      %c15_i32_61 = arith.constant 15 : i32
      %85 = tpu.dynamic_rotate %79 by %c15_i32_61 dim 1 : vector<1x16x8xf32>, i32 -> vector<1x16x8xf32>
      %cst_62 = arith.constant 0.000000e+00 : f32
      %86 = vector.shape_cast %4 : vector<1x16x1xi1> to vector<1x16x1xi1>
      %87 = vector.broadcast %86 : vector<1x16x1xi1> to vector<1x16x8xi1>
      %88 = vector.broadcast %cst_62 : f32 to vector<1x16x8xf32>
      %89 = arith.select %87, %88, %85 : vector<1x16x8xi1>, vector<1x16x8xf32>
      %90 = tpu.concatenate %84, %79, %89 in 2 : vector<1x16x8xf32>, vector<1x16x8xf32>, vector<1x16x8xf32> -> vector<1x16x24xf32>
      %91 = arith.truncf %90 : vector<1x16x24xf32> to vector<1x16x24xbf16>
      %c9 = arith.constant 9 : index
      %c0_63 = arith.constant 0 : index
      %c0_64 = arith.constant 0 : index
      %92 = vector.load %arg12[%c9, %c0_63, %c0_64] : memref<10x16x24xbf16, #tpu.memory_space<vmem>>, vector<1x16x24xbf16>
      tpu.vector_store %arg12[%c9, %c0_63, %c0_64], %91 {strides = array<i32>} : memref<10x16x24xbf16, #tpu.memory_space<vmem>>, vector<1x16x24xbf16>,
    } else {
    }
    %c0_21 = arith.constant 0 : index
    %c0_22 = arith.constant 0 : index
    %c0_23 = arith.constant 0 : index
    %41 = vector.load %arg12[%c0_21, %c0_22, %c0_23] : memref<10x16x24xbf16, #tpu.memory_space<vmem>>, vector<8x16x24xbf16>
    %c1_24 = arith.constant 1 : index
    %c0_25 = arith.constant 0 : index
    %c0_26 = arith.constant 0 : index
    %42 = vector.load %arg12[%c1_24, %c0_25, %c0_26] : memref<10x16x24xbf16, #tpu.memory_space<vmem>>, vector<8x16x24xbf16>
    %c2 = arith.constant 2 : index
    %c0_27 = arith.constant 0 : index
    %c0_28 = arith.constant 0 : index
    %43 = vector.load %arg12[%c2, %c0_27, %c0_28] : memref<10x16x24xbf16, #tpu.memory_space<vmem>>, vector<8x16x24xbf16>
    %44 = tpu.concatenate %41, %42, %43 in 2 : vector<8x16x24xbf16>, vector<8x16x24xbf16>, vector<8x16x24xbf16> -> vector<8x16x72xbf16>
    %45 = vector.shape_cast %44 : vector<8x16x72xbf16> to vector<128x72xbf16>
    %c0_29 = arith.constant 0 : index
    %c0_30 = arith.constant 0 : index
    %46 = vector.load %arg7[%c0_29, %c0_30] : memref<72x8xbf16, #tpu.memory_space<vmem>>, vector<72x8xbf16>
    %cst_31 = arith.constant dense<0.000000e+00> : vector<128x8xf32>
    %47 = tpu.matmul %45, %46, %cst_31 {dimension_numbers = #tpu.dot_dimension_numbers<[1], [0], [0], [1], [0, 0, 1, 1], [], []>} : vector<128x72xbf16>, vector<72x8xbf16>, vector<128x8xf32> -> vector<128x8xf32>
    %c0_32 = arith.constant 0 : index
    %c0_33 = arith.constant 0 : index
    %48 = vector.load %arg8[%c0_32, %c0_33] : memref<1x8xf32, #tpu.memory_space<vmem>>, vector<1x8xf32>
    %49 = vector.broadcast %48 : vector<1x8xf32> to vector<128x8xf32>
    %50 = arith.addf %47, %49 : vector<128x8xf32>
    %cst_34 = arith.constant 0.000000e+00 : f32
    %51 = vector.broadcast %cst_34 : f32 to vector<128x8xf32>
    %52 = arith.maximumf %50, %51 : vector<128x8xf32>
    %53 = arith.truncf %52 : vector<128x8xf32> to vector<128x8xbf16>
    %c0_35 = arith.constant 0 : index
    %c0_36 = arith.constant 0 : index
    %54 = vector.load %arg9[%c0_35, %c0_36] : memref<8x32xbf16, #tpu.memory_space<vmem>>, vector<8x32xbf16>
    %cst_37 = arith.constant dense<0.000000e+00> : vector<128x32xf32>
    %55 = tpu.matmul %53, %54, %cst_37 {dimension_numbers = #tpu.dot_dimension_numbers<[1], [0], [0], [1], [0, 0, 1, 1], [], []>} : vector<128x8xbf16>, vector<8x32xbf16>, vector<128x32xf32> -> vector<128x32xf32>
    %c0_38 = arith.constant 0 : index
    %c0_39 = arith.constant 0 : index
    %56 = vector.load %arg10[%c0_38, %c0_39] : memref<1x32xf32, #tpu.memory_space<vmem>>, vector<1x32xf32>
    %57 = vector.broadcast %56 : vector<1x32xf32> to vector<128x32xf32>
    %58 = arith.addf %55, %57 : vector<128x32xf32>
    %c0_40 = arith.constant 0 : index
    %c0_41 = arith.constant 0 : index
    %c0_42 = arith.constant 0 : index
    %c0_43 = arith.constant 0 : index
    %59 = vector.load %arg3[%c0_40, %c0_41, %c0_42, %c0_43] : memref<1x8x16x32xbf16, #tpu.memory_space<vmem>>, vector<1x8x16x32xbf16>
    %60 = vector.shape_cast %59 : vector<1x8x16x32xbf16> to vector<8x16x32xbf16>
    %61 = vector.shape_cast %60 : vector<8x16x32xbf16> to vector<128x32xbf16>
    %62 = arith.extf %61 : vector<128x32xbf16> to vector<128x32xf32>
    %63 = arith.addf %58, %62 : vector<128x32xf32>
    %cst_44 = arith.constant 0.000000e+00 : f32
    %64 = vector.broadcast %cst_44 : f32 to vector<128x32xf32>
    %65 = arith.maximumf %63, %64 : vector<128x32xf32>
    %66 = vector.shape_cast %65 : vector<128x32xf32> to vector<1x8x16x32xf32>
    %67 = arith.truncf %66 : vector<1x8x16x32xf32> to vector<1x8x16x32xbf16>
    %c0_45 = arith.constant 0 : index
    %c0_46 = arith.constant 0 : index
    %c0_47 = arith.constant 0 : index
    %c0_48 = arith.constant 0 : index
    %68 = vector.load %arg11[%c0_45, %c0_46, %c0_47, %c0_48] : memref<1x8x16x32xbf16, #tpu.memory_space<vmem>>, vector<1x8x16x32xbf16>
    tpu.vector_store %arg11[%c0_45, %c0_46, %c0_47, %c0_48], %67 {strides = array<i32>} : memref<1x8x16x32xbf16, #tpu.memory_space<vmem>>, vector<1x8x16x32xbf16>,
    return
  }
  func.func @transform_0(%arg0: i32, %arg1: i32) -> (i32, i32, i32, i32) {
    %c8_i32 = arith.constant 8 : i32
    %0 = arith.muli %arg1, %c8_i32 : i32
    %c1_i32 = arith.constant 1 : i32
    %1 = arith.subi %0, %c1_i32 : i32
    %c0_i32 = arith.constant 0 : i32
    %2 = arith.maxsi %1, %c0_i32 : i32
    %c0_i32_0 = arith.constant 0 : i32
    %c0_i32_1 = arith.constant 0 : i32
    %c0_i32_2 = arith.constant 0 : i32
    return %arg0, %2, %c0_i32_0, %c0_i32_1 : i32, i32, i32, i32
  }
  func.func @transform_1(%arg0: i32, %arg1: i32) -> (i32, i32, i32, i32) {
    %c0_i32 = arith.constant 0 : i32
    %c0_i32_0 = arith.constant 0 : i32
    %c0_i32_1 = arith.constant 0 : i32
    return %arg0, %arg1, %c0_i32, %c0_i32_0 : i32, i32, i32, i32
  }
  func.func @transform_2(%arg0: i32, %arg1: i32) -> (i32, i32, i32, i32) {
    %c1_i32 = arith.constant 1 : i32
    %0 = arith.addi %arg1, %c1_i32 : i32
    %c8_i32 = arith.constant 8 : i32
    %1 = arith.muli %0, %c8_i32 : i32
    %c15_i32 = arith.constant 15 : i32
    %2 = arith.minsi %1, %c15_i32 : i32
    %c0_i32 = arith.constant 0 : i32
    %c0_i32_0 = arith.constant 0 : i32
    %c0_i32_1 = arith.constant 0 : i32
    return %arg0, %2, %c0_i32, %c0_i32_0 : i32, i32, i32, i32
  }
  func.func @transform_3(%arg0: i32, %arg1: i32) -> (i32, i32) {
    %c0_i32 = arith.constant 0 : i32
    %c0_i32_0 = arith.constant 0 : i32
    %c0_i32_1 = arith.constant 0 : i32
    return %c0_i32, %c0_i32_0 : i32, i32
  }
  func.func @transform_4(%arg0: i32, %arg1: i32) -> (i32, i32) {
    %c0_i32 = arith.constant 0 : i32
    %c0_i32_0 = arith.constant 0 : i32
    %c0_i32_1 = arith.constant 0 : i32
    return %c0_i32, %c0_i32_0 : i32, i32
  }
  func.func @transform_5(%arg0: i32, %arg1: i32) -> (i32, i32) {
    %c0_i32 = arith.constant 0 : i32
    %c0_i32_0 = arith.constant 0 : i32
    %c0_i32_1 = arith.constant 0 : i32
    return %c0_i32, %c0_i32_0 : i32, i32
  }
  func.func @transform_6(%arg0: i32, %arg1: i32) -> (i32, i32) {
    %c0_i32 = arith.constant 0 : i32
    %c0_i32_0 = arith.constant 0 : i32
    %c0_i32_1 = arith.constant 0 : i32
    return %c0_i32, %c0_i32_0 : i32, i32
  }
  func.func @transform_7(%arg0: i32, %arg1: i32) -> (i32, i32) {
    %c0_i32 = arith.constant 0 : i32
    %c0_i32_0 = arith.constant 0 : i32
    %c0_i32_1 = arith.constant 0 : i32
    return %c0_i32, %c0_i32_0 : i32, i32
  }
  func.func @transform_8(%arg0: i32, %arg1: i32) -> (i32, i32) {
    %c0_i32 = arith.constant 0 : i32
    %c0_i32_0 = arith.constant 0 : i32
    %c0_i32_1 = arith.constant 0 : i32
    return %c0_i32, %c0_i32_0 : i32, i32
  }
  func.func @transform_9(%arg0: i32, %arg1: i32) -> (i32, i32, i32, i32) {
    %c0_i32 = arith.constant 0 : i32
    %c0_i32_0 = arith.constant 0 : i32
    %c0_i32_1 = arith.constant 0 : i32
    return %arg0, %arg1, %c0_i32, %c0_i32_0 : i32, i32, i32, i32
  }
}

</mosaic_0001>

<llo_original>
// kernel: bottleneck_forward.1
$region0: #{bottleneck_forward.1}
  #allocation0 [shape = 'u32[]', space=smem, size = 0x4, offset = 0x4, fixed_abs, tag = 'smem constant byte address 0x4 - core index']
  #allocation1 [shape = 'u32[144,128]{1,0:T(1,128)}', space=vmem, size = 0x12000, scoped, tag = 'internal scratch']
  #allocation2 [shape = 'bf16[10,16,24]{2,1,0:T(16,128)(2,1)}', space=vmem, size = 0xa000, scoped, tag = 'scratch operand']
  %s0 = inlined_call_operand.vmem [shape: bf16[2,16,16,32], index: 0, kind: input, shape index: {}, may-alias: {0,1,2}]
  %s1 = inlined_call_operand.vmem [shape: bf16[2,16,16,32], index: 1, kind: input, shape index: {}, may-alias: {0,1,2}]
  %s2 = inlined_call_operand.vmem [shape: bf16[2,16,16,32], index: 2, kind: input, shape index: {}, may-alias: {0,1,2}]
  %s3 = inlined_call_operand.vmem [shape: bf16[32,8], index: 3, kind: input, shape index: {}]
  %s4 = inlined_call_operand.vmem [shape: f32[1,8], index: 4, kind: input, shape index: {}]
  %s5 = inlined_call_operand.vmem [shape: bf16[72,8], index: 5, kind: input, shape index: {}]
  %s6 = inlined_call_operand.vmem [shape: f32[1,8], index: 6, kind: input, shape index: {}]
  %s7 = inlined_call_operand.vmem [shape: bf16[8,32], index: 7, kind: input, shape index: {}]
  %s8 = inlined_call_operand.vmem [shape: f32[1,32], index: 8, kind: input, shape index: {}]
  %s9 = inlined_call_operand.hbm [shape: bf16[2,16,16,32], index: 9, kind: output, shape index: {}]
  %s10 = sld [smem:[#allocation0]]
  $region85: #{bottleneck_forward.1} parent=0
    _
  %s12 = ssub.s32 1, %s10
  %s13 = scalar_select 0, %s12, %s10
  $region1: #{bottleneck_forward.1} parent=0
    #allocation3 [shape = 'u8[65536]{0}', space=vmem, size = 0x10000, scoped, tag = 'output window, operand 0']
    #allocation4 [shape = 's32[2]{0}', space=sflag, size = 0x8, scoped, tag = 'scoped memory for bottleneck_forward.1']
    %14 = vsyncpa [#allocation4], 0
    %s15 = scalar_lea.sflag [#allocation4], 1
    %16 = vsyncpa %s15, 0
    loop: start=0, step=1, limit=6
    $region2: #{bottleneck_forward.1} parent=1 // loop_pre_header
      _
    $region3: #{bottleneck_forward.1} parent=1 // loop_header
      %s18 = sphi 0, %s22
      %p19 = scmp.ge.s32.totalorder %s18, 6
      %s25 = sphi 0, %s37
      %s26 = sphi 0, %s33
      %s27 = sphi 0, %s25
      %s28 = sphi 0, %s26
      %s29 = sphi 0, %s27
      %s30 = sphi 0, %s28
      %s50 = sphi 0, %s52
      %s53 = sphi 0, %s50
      %s54 = sphi 0, %s53
      %s70 = sphi 0, %s54
      %s78 = sphi 0, %s80
      %s81 = sphi 0, %s78
      %s82 = sphi 0, %s81
      %s98 = sphi 0, %s82
      %s114 = sphi 0, %s116
      %s117 = sphi 0, %s114
      %s118 = sphi 0, %s117
      %s134 = sphi 0, %s118
      %s138 = sphi 0, %s138
      %s140 = sphi 0, %s138
      %s141 = sphi 0, %s140
      %s155 = sphi 0, %s141
      %s159 = sphi 0, %s159
      %s161 = sphi 0, %s159
      %s162 = sphi 0, %s161
      %s176 = sphi 0, %s162
      %s180 = sphi 0, %s180
      %s182 = sphi 0, %s180
      %s183 = sphi 0, %s182
      %s197 = sphi 0, %s183
      %s201 = sphi 0, %s201
      %s203 = sphi 0, %s201
      %s204 = sphi 0, %s203
      %s218 = sphi 0, %s204
      %s222 = sphi 0, %s222
      %s224 = sphi 0, %s222
      %s225 = sphi 0, %s224
      %s239 = sphi 0, %s225
      %s243 = sphi 0, %s243
      %s245 = sphi 0, %s243
      %s246 = sphi 0, %s245
      %s260 = sphi 0, %s246
      %s268 = sphi 0, %s270
      %s271 = sphi 0, %s268
      %s272 = sphi 0, %s271
      %s288 = sphi 0, %s272
    $region4: #{bottleneck_forward.1} parent=1 // loop_header_branch
      %21 = sbr.rel (%p19) target = $region8
    $region5: #{bottleneck_forward.1} parent=1 // loop_body
      %s23 = ssub.s32 %s18, 1
      %s24 = ssub.s32 %s18, 2
      %s31 = sadd.s32 1, %s26
      %p32 = scmp.ge.s32.totalorder %s31, 2
      %s33 = scalar_select %p32, 0, %s31
      %s34 = sadd.s32 1, %s25
      %s35 = scalar_select %p32, %s34, %s25
      %p36 = scmp.ge.s32.totalorder %s35, 2
      %s37 = scalar_select %p36, 0, %s35
      %s38 = smul.u32 %s26, 8
      %s39 = ssub.s32 %s38, 1
      %p40 = scmp.gt.s32.totalorder %s39, 0
      %s41 = scalar_select %p40, %s39, 0
      %s42 = smul.u32 %s33, 8
      %s43 = ssub.s32 %s42, 1
      %p44 = scmp.gt.s32.totalorder %s43, 0
      %s45 = scalar_select %p44, %s43, 0
      %s46 = ssub.s32 %s25, %s37
      %s47 = ssub.s32 %s41, %s45
      %s48 = sor.u32 %s46, %s47
      %p49 = scmp.eq.s32.totalorder %s48, 0
      %s51 = sadd.s32 %s50, 1
      %s52 = scalar_select %p49, %s50, %s51
      %p55 = pneg %p49
      %p56 = scmp.eq.s32.totalorder %s18, 3
      %p57 = por %p55, %p56
      %p58 = scmp.ne.s32.totalorder %s50, %s53
      %p59 = scmp.eq.s32.totalorder %s18, 0
      %p60 = por %p58, %p59
      %p61 = scmp.ne.s32.totalorder %s50, %s53
      %p62 = scmp.eq.s32.totalorder %s23, 3
      %p63 = por %p61, %p62
      %p64 = scmp.ne.s32.totalorder %s53, %s54
      %p65 = scmp.eq.s32.totalorder %s23, 0
      %p66 = por %p64, %p65
      %p67 = scmp.ne.s32.totalorder %s53, %s54
      %p68 = scmp.eq.s32.totalorder %s24, 3
      %p69 = por %p67, %p68
      %p71 = scmp.ne.s32.totalorder %s54, %s70
      %p72 = scmp.eq.s32.totalorder %s24, 0
      %p73 = por %p71, %p72
      %s74 = ssub.s32 %s25, %s37
      %s75 = ssub.s32 %s26, %s33
      %s76 = sor.u32 %s74, %s75
      %p77 = scmp.eq.s32.totalorder %s76, 0
      %s79 = sadd.s32 %s78, 1
      %s80 = scalar_select %p77, %s78, %s79
      %p83 = pneg %p77
      %p84 = scmp.eq.s32.totalorder %s18, 3
      %p85 = por %p83, %p84
      %p86 = scmp.ne.s32.totalorder %s78, %s81
      %p87 = scmp.eq.s32.totalorder %s18, 0
      %p88 = por %p86, %p87
      %p89 = scmp.ne.s32.totalorder %s78, %s81
      %p90 = scmp.eq.s32.totalorder %s23, 3
      %p91 = por %p89, %p90
      %p92 = scmp.ne.s32.totalorder %s81, %s82
      %p93 = scmp.eq.s32.totalorder %s23, 0
      %p94 = por %p92, %p93
      %p95 = scmp.ne.s32.totalorder %s81, %s82
      %p96 = scmp.eq.s32.totalorder %s24, 3
      %p97 = por %p95, %p96
      %p99 = scmp.ne.s32.totalorder %s82, %s98
      %p100 = scmp.eq.s32.totalorder %s24, 0
      %p101 = por %p99, %p100
      %s102 = sadd.s32 %s26, 1
      %s103 = smul.u32 %s102, 8
      %p104 = scmp.lt.s32.totalorder %s103, 15
      %s105 = scalar_select %p104, %s103, 15
      %s106 = sadd.s32 %s33, 1
      %s107 = smul.u32 %s106, 8
      %p108 = scmp.lt.s32.totalorder %s107, 15
      %s109 = scalar_select %p108, %s107, 15
      %s110 = ssub.s32 %s25, %s37
      %s111 = ssub.s32 %s105, %s109
      %s112 = sor.u32 %s110, %s111
      %p113 = scmp.eq.s32.totalorder %s112, 0
      %s115 = sadd.s32 %s114, 1
      %s116 = scalar_select %p113, %s114, %s115
      %p119 = pneg %p113
      %p120 = scmp.eq.s32.totalorder %s18, 3
      %p121 = por %p119, %p120
      %p122 = scmp.ne.s32.totalorder %s114, %s117
      %p123 = scmp.eq.s32.totalorder %s18, 0
      %p124 = por %p122, %p123
      %p125 = scmp.ne.s32.totalorder %s114, %s117
      %p126 = scmp.eq.s32.totalorder %s23, 3
      %p127 = por %p125, %p126
      %p128 = scmp.ne.s32.totalorder %s117, %s118
      %p129 = scmp.eq.s32.totalorder %s23, 0
      %p130 = por %p128, %p129
      %p131 = scmp.ne.s32.totalorder %s117, %s118
      %p132 = scmp.eq.s32.totalorder %s24, 3
      %p133 = por %p131, %p132
      %p135 = scmp.ne.s32.totalorder %s118, %s134
      %p136 = scmp.eq.s32.totalorder %s24, 0
      %p137 = por %p135, %p136
      %s139 = sadd.s32 %s138, 1
      %p142 = scmp.eq.s32.totalorder %s18, 3
      %p143 = scmp.ne.s32.totalorder %s138, %s140
      %p144 = scmp.eq.s32.totalorder %s18, 0
      %p145 = por %p143, %p144
      %p146 = scmp.ne.s32.totalorder %s138, %s140
      %p147 = scmp.eq.s32.totalorder %s23, 3
      %p148 = por %p146, %p147
      %p149 = scmp.ne.s32.totalorder %s140, %s141
      %p150 = scmp.eq.s32.totalorder %s23, 0
      %p151 = por %p149, %p150
      %p152 = scmp.ne.s32.totalorder %s140, %s141
      %p153 = scmp.eq.s32.totalorder %s24, 3
      %p154 = por %p152, %p153
      %p156 = scmp.ne.s32.totalorder %s141, %s155
      %p157 = scmp.eq.s32.totalorder %s24, 0
      %p158 = por %p156, %p157
      %s160 = sadd.s32 %s159, 1
      %p163 = scmp.eq.s32.totalorder %s18, 3
      %p164 = scmp.ne.s32.totalorder %s159, %s161
      %p165 = scmp.eq.s32.totalorder %s18, 0
      %p166 = por %p164, %p165
      %p167 = scmp.ne.s32.totalorder %s159, %s161
      %p168 = scmp.eq.s32.totalorder %s23, 3
      %p169 = por %p167, %p168
      %p170 = scmp.ne.s32.totalorder %s161, %s162
      %p171 = scmp.eq.s32.totalorder %s23, 0
      %p172 = por %p170, %p171
      %p173 = scmp.ne.s32.totalorder %s161, %s162
      %p174 = scmp.eq.s32.totalorder %s24, 3
      %p175 = por %p173, %p174
      %p177 = scmp.ne.s32.totalorder %s162, %s176
      %p178 = scmp.eq.s32.totalorder %s24, 0
      %p179 = por %p177, %p178
      %s181 = sadd.s32 %s180, 1
      %p184 = scmp.eq.s32.totalorder %s18, 3
      %p185 = scmp.ne.s32.totalorder %s180, %s182
      %p186 = scmp.eq.s32.totalorder %s18, 0
      %p187 = por %p185, %p186
      %p188 = scmp.ne.s32.totalorder %s180, %s182
      %p189 = scmp.eq.s32.totalorder %s23, 3
      %p190 = por %p188, %p189
      %p191 = scmp.ne.s32.totalorder %s182, %s183
      %p192 = scmp.eq.s32.totalorder %s23, 0
      %p193 = por %p191, %p192
      %p194 = scmp.ne.s32.totalorder %s182, %s183
      %p195 = scmp.eq.s32.totalorder %s24, 3
      %p196 = por %p194, %p195
      %p198 = scmp.ne.s32.totalorder %s183, %s197
      %p199 = scmp.eq.s32.totalorder %s24, 0
      %p200 = por %p198, %p199
      %s202 = sadd.s32 %s201, 1
      %p205 = scmp.eq.s32.totalorder %s18, 3
      %p206 = scmp.ne.s32.totalorder %s201, %s203
      %p207 = scmp.eq.s32.totalorder %s18, 0
      %p208 = por %p206, %p207
      %p209 = scmp.ne.s32.totalorder %s201, %s203
      %p210 = scmp.eq.s32.totalorder %s23, 3
      %p211 = por %p209, %p210
      %p212 = scmp.ne.s32.totalorder %s203, %s204
      %p213 = scmp.eq.s32.totalorder %s23, 0
      %p214 = por %p212, %p213
      %p215 = scmp.ne.s32.totalorder %s203, %s204
      %p216 = scmp.eq.s32.totalorder %s24, 3
      %p217 = por %p215, %p216
      %p219 = scmp.ne.s32.totalorder %s204, %s218
      %p220 = scmp.eq.s32.totalorder %s24, 0
      %p221 = por %p219, %p220
      %s223 = sadd.s32 %s222, 1
      %p226 = scmp.eq.s32.totalorder %s18, 3
      %p227 = scmp.ne.s32.totalorder %s222, %s224
      %p228 = scmp.eq.s32.totalorder %s18, 0
      %p229 = por %p227, %p228
      %p230 = scmp.ne.s32.totalorder %s222, %s224
      %p231 = scmp.eq.s32.totalorder %s23, 3
      %p232 = por %p230, %p231
      %p233 = scmp.ne.s32.totalorder %s224, %s225
      %p234 = scmp.eq.s32.totalorder %s23, 0
      %p235 = por %p233, %p234
      %p236 = scmp.ne.s32.totalorder %s224, %s225
      %p237 = scmp.eq.s32.totalorder %s24, 3
      %p238 = por %p236, %p237
      %p240 = scmp.ne.s32.totalorder %s225, %s239
      %p241 = scmp.eq.s32.totalorder %s24, 0
      %p242 = por %p240, %p241
      %s244 = sadd.s32 %s243, 1
      %p247 = scmp.eq.s32.totalorder %s18, 3
      %p248 = scmp.ne.s32.totalorder %s243, %s245
      %p249 = scmp.eq.s32.totalorder %s18, 0
      %p250 = por %p248, %p249
      %p251 = scmp.ne.s32.totalorder %s243, %s245
      %p252 = scmp.eq.s32.totalorder %s23, 3
      %p253 = por %p251, %p252
      %p254 = scmp.ne.s32.totalorder %s245, %s246
      %p255 = scmp.eq.s32.totalorder %s23, 0
      %p256 = por %p254, %p255
      %p257 = scmp.ne.s32.totalorder %s245, %s246
      %p258 = scmp.eq.s32.totalorder %s24, 3
      %p259 = por %p257, %p258
      %p261 = scmp.ne.s32.totalorder %s246, %s260
      %p262 = scmp.eq.s32.totalorder %s24, 0
      %p263 = por %p261, %p262
      %s264 = ssub.s32 %s25, %s37
      %s265 = ssub.s32 %s26, %s33
      %s266 = sor.u32 %s264, %s265
      %p267 = scmp.eq.s32.totalorder %s266, 0
      %s269 = sadd.s32 %s268, 1
      %s270 = scalar_select %p267, %s268, %s269
      %p273 = pneg %p267
      %p274 = scmp.eq.s32.totalorder %s18, 3
      %p275 = por %p273, %p274
      %p276 = scmp.ne.s32.totalorder %s268, %s271
      %p277 = scmp.eq.s32.totalorder %s18, 0
      %p278 = por %p276, %p277
      %p279 = scmp.ne.s32.totalorder %s268, %s271
      %p280 = scmp.eq.s32.totalorder %s23, 3
      %p281 = por %p279, %p280
      %p282 = scmp.ne.s32.totalorder %s271, %s272
      %p283 = scmp.eq.s32.totalorder %s23, 0
      %p284 = por %p282, %p283
      %p285 = scmp.ne.s32.totalorder %s271, %s272
      %p286 = scmp.eq.s32.totalorder %s24, 3
      %p287 = por %p285, %p286
      %p289 = scmp.ne.s32.totalorder %s272, %s288
      %p290 = scmp.eq.s32.totalorder %s24, 0
      %p291 = por %p289, %p290
      %p292 = scmp.le.s32.totalorder 1, %s18
      %p293 = scmp.lt.s32.totalorder %s18, 5
      %p294 = pnand %p292, %p293
      %p295 = pneg %p294
      // Predicated region
      $region9: #{bottleneck_forward.1} parent=5 // pred_check
        _
      $region10: #{bottleneck_forward.1} parent=5 // pred_check_branch
        %297 = sbr.rel (%p294) target = $region12
      $region11: #{bottleneck_forward.1} parent=5 // pred_region
        %s298 = ssub.s32 %s18, 1
        // Predicated region
        $region13: #{bottleneck_forward.1} parent=11 // pred_check
          %p299 = pneg %p151
        $region14: #{bottleneck_forward.1} parent=11 // pred_check_branch
          %301 = sbr.rel (%p299) target = $region16
        $region15: #{bottleneck_forward.1} parent=11 // pred_region
          _
        $region16: #{bottleneck_forward.1} parent=11 // pred_fallthru
          _
        // Predicated region
        $region17: #{bottleneck_forward.1} parent=11 // pred_check
          %p302 = pneg %p172
        $region18: #{bottleneck_forward.1} parent=11 // pred_check_branch
          %304 = sbr.rel (%p302) target = $region20
        $region19: #{bottleneck_forward.1} parent=11 // pred_region
          _
        $region20: #{bottleneck_forward.1} parent=11 // pred_fallthru
          _
        // Predicated region
        $region21: #{bottleneck_forward.1} parent=11 // pred_check
          %p305 = pneg %p193
        $region22: #{bottleneck_forward.1} parent=11 // pred_check_branch
          %307 = sbr.rel (%p305) target = $region24
        $region23: #{bottleneck_forward.1} parent=11 // pred_region
          _
        $region24: #{bottleneck_forward.1} parent=11 // pred_fallthru
          _
        // Predicated region
        $region25: #{bottleneck_forward.1} parent=11 // pred_check
          %p308 = pneg %p214
        $region26: #{bottleneck_forward.1} parent=11 // pred_check_branch
          %310 = sbr.rel (%p308) target = $region28
        $region27: #{bottleneck_forward.1} parent=11 // pred_region
          _
        $region28: #{bottleneck_forward.1} parent=11 // pred_fallthru
          _
        // Predicated region
        $region29: #{bottleneck_forward.1} parent=11 // pred_check
          %p311 = pneg %p235
        $region30: #{bottleneck_forward.1} parent=11 // pred_check_branch
          %313 = sbr.rel (%p311) target = $region32
        $region31: #{bottleneck_forward.1} parent=11 // pred_region
          _
        $region32: #{bottleneck_forward.1} parent=11 // pred_fallthru
          _
        // Predicated region
        $region33: #{bottleneck_forward.1} parent=11 // pred_check
          %p314 = pneg %p256
        $region34: #{bottleneck_forward.1} parent=11 // pred_check_branch
          %316 = sbr.rel (%p314) target = $region36
        $region35: #{bottleneck_forward.1} parent=11 // pred_region
          _
        $region36: #{bottleneck_forward.1} parent=11 // pred_fallthru
          _
      $region12: #{bottleneck_forward.1} parent=5 // pred_fallthru
        _
      %p317 = scmp.lt.s32.totalorder %s18, 4
      // Predicated region
      $region37: #{bottleneck_forward.1} parent=5 // pred_check
        %p318 = pneg %p317
      $region38: #{bottleneck_forward.1} parent=5 // pred_check_branch
        %320 = sbr.rel (%p318) target = $region40
      $region39: #{bottleneck_forward.1} parent=5 // pred_region
        // Predicated region
        $region41: #{bottleneck_forward.1} parent=39 // pred_check
          %p321 = pneg %p60
        $region42: #{bottleneck_forward.1} parent=39 // pred_check_branch
          %323 = sbr.rel (%p321) target = $region44
        $region43: #{bottleneck_forward.1} parent=39 // pred_region
          %s324 = smul.u32 %s26, 8
          %s325 = ssub.s32 %s324, 1
          %p326 = scmp.gt.s32.totalorder %s325, 0
          %s327 = scalar_select %p326, %s325, 0
          %p328 = scmp.lt.s32.totalorder %s25, 1
          %s329 = scalar_select %p328, %s25, 1
          %p330 = scmp.lt.s32.totalorder %s327, 15
          %s331 = scalar_select %p330, %s327, 15
          %s332 = smul.addr %s331, 2
          %s333 = smul.addr %s329, 32
          %s334 = sadd.s32 %s332, %s333
          %s335 = smul.addr %s334, 4
          %s336 = scalar_lea.vmem %s0, %s335
          %s337 = smul.u32 %s26, 8
          %s338 = ssub.s32 %s337, 1
          %p339 = scmp.gt.s32.totalorder %s338, 0
          %s340 = scalar_select %p339, %s338, 0
        $region44: #{bottleneck_forward.1} parent=39 // pred_fallthru
          _
        // Predicated region
        $region45: #{bottleneck_forward.1} parent=39 // pred_check
          %p341 = pneg %p88
        $region46: #{bottleneck_forward.1} parent=39 // pred_check_branch
          %343 = sbr.rel (%p341) target = $region48
        $region47: #{bottleneck_forward.1} parent=39 // pred_region
          %s344 = smul.u32 8, %s26
          %p345 = scmp.lt.s32.totalorder %s25, 1
          %s346 = scalar_select %p345, %s25, 1
          %p347 = scmp.lt.s32.totalorder %s344, 15
          %s348 = scalar_select %p347, %s344, 15
          %s349 = smul.addr %s348, 2
          %s350 = smul.addr %s346, 32
          %s351 = sadd.s32 %s349, %s350
          %s352 = smul.addr %s351, 4
          %s353 = scalar_lea.vmem %s1, %s352
          %s354 = smul.u32 8, %s26
        $region48: #{bottleneck_forward.1} parent=39 // pred_fallthru
          _
        // Predicated region
        $region49: #{bottleneck_forward.1} parent=39 // pred_check
          %p355 = pneg %p124
        $region50: #{bottleneck_forward.1} parent=39 // pred_check_branch
          %357 = sbr.rel (%p355) target = $region52
        $region51: #{bottleneck_forward.1} parent=39 // pred_region
          %s358 = sadd.s32 %s26, 1
          %s359 = smul.u32 %s358, 8
          %p360 = scmp.lt.s32.totalorder %s359, 15
          %s361 = scalar_select %p360, %s359, 15
          %p362 = scmp.lt.s32.totalorder %s25, 1
          %s363 = scalar_select %p362, %s25, 1
          %p364 = scmp.lt.s32.totalorder %s361, 15
          %s365 = scalar_select %p364, %s361, 15
          %s366 = smul.addr %s365, 2
          %s367 = smul.addr %s363, 32
          %s368 = sadd.s32 %s366, %s367
          %s369 = smul.addr %s368, 4
          %s370 = scalar_lea.vmem %s2, %s369
          %s371 = sadd.s32 %s26, 1
          %s372 = smul.u32 %s371, 8
          %p373 = scmp.lt.s32.totalorder %s372, 15
          %s374 = scalar_select %p373, %s372, 15
        $region52: #{bottleneck_forward.1} parent=39 // pred_fallthru
          _
      $region40: #{bottleneck_forward.1} parent=5 // pred_fallthru
        _
      %p375 = scmp.le.s32.totalorder 1, %s18
      %p376 = scmp.lt.s32.totalorder %s18, 5
      %p377 = pnand %p375, %p376
      %p378 = pneg %p377
      // Predicated region
      $region53: #{bottleneck_forward.1} parent=5 // pred_check
        _
      $region54: #{bottleneck_forward.1} parent=5 // pred_check_branch
        %380 = sbr.rel (%p377) target = $region56
      $region55: #{bottleneck_forward.1} parent=5 // pred_region
        %s381 = ssub.s32 %s18, 1
        %s382 = smul.u32 %s28, 8
        %s383 = ssub.s32 %s382, 1
        %p384 = scmp.gt.s32.totalorder %s383, 0
        %s385 = scalar_select %p384, %s383, 0
        %p386 = scmp.lt.s32.totalorder %s27, 1
        %s387 = scalar_select %p386, %s27, 1
        %p388 = scmp.lt.s32.totalorder %s385, 15
        %s389 = scalar_select %p388, %s385, 15
        %s390 = smul.addr %s389, 2
        %s391 = smul.addr %s387, 32
        %s392 = sadd.s32 %s390, %s391
        %s393 = smul.addr %s392, 4
        %s394 = scalar_lea.vmem %s0, %s393
        %p395 = pneg %p66
        %p396 = pneg %p63
        %s397 = smul.u32 8, %s28
        %p398 = scmp.lt.s32.totalorder %s27, 1
        %s399 = scalar_select %p398, %s27, 1
        %p400 = scmp.lt.s32.totalorder %s397, 15
        %s401 = scalar_select %p400, %s397, 15
        %s402 = smul.addr %s401, 2
        %s403 = smul.addr %s399, 32
        %s404 = sadd.s32 %s402, %s403
        %s405 = smul.addr %s404, 4
        %s406 = scalar_lea.vmem %s1, %s405
        %p407 = pneg %p94
        %p408 = pneg %p91
        %s409 = sadd.s32 %s28, 1
        %s410 = smul.u32 %s409, 8
        %p411 = scmp.lt.s32.totalorder %s410, 15
        %s412 = scalar_select %p411, %s410, 15
        %p413 = scmp.lt.s32.totalorder %s27, 1
        %s414 = scalar_select %p413, %s27, 1
        %p415 = scmp.lt.s32.totalorder %s412, 15
        %s416 = scalar_select %p415, %s412, 15
        %s417 = smul.addr %s416, 2
        %s418 = smul.addr %s414, 32
        %s419 = sadd.s32 %s417, %s418
        %s420 = smul.addr %s419, 4
        %s421 = scalar_lea.vmem %s2, %s420
        %p422 = pneg %p130
        %p423 = pneg %p127
        %p424 = pneg %p151
        %p425 = pneg %p148
        %p426 = pneg %p172
        %p427 = pneg %p169
        %p428 = pneg %p193
        %p429 = pneg %p190
        %p430 = pneg %p214
        %p431 = pneg %p211
        %p432 = pneg %p235
        %p433 = pneg %p232
        %p434 = pneg %p256
        %p435 = pneg %p253
        %p436 = pneg %p284
        %p437 = pneg %p281
        %s438 = sand.u32 %s271, 1
        %s439 = scalar_lea.sflag [#allocation4], %s438
        %s440 = sand.u32 %s271, 1
        %s441 = smul.addr %s440, 64
        %s442 = scalar_lea.vmem [#allocation3], %s441
        %s443 = smul.u32 %s28, 8
        %s444 = ssub.s32 %s443, 1
        %p445 = scmp.gt.s32.totalorder %s444, 0
        %s446 = scalar_select %p445, %s444, 0
        %p447 = scmp.lt.s32.totalorder %s27, 1
        %s448 = scalar_select %p447, %s27, 1
        %p449 = scmp.lt.s32.totalorder %s446, 15
        %s450 = scalar_select %p449, %s446, 15
        %s451 = smul.addr %s450, 2
        %s452 = smul.addr %s448, 32
        %s453 = sadd.s32 %s451, %s452
        %s454 = smul.addr %s453, 4
        %s455 = scalar_lea.vmem %s0, %s454
        %s456 = smul.u32 %s28, 8
        %s457 = ssub.s32 %s456, 1
        %p458 = scmp.gt.s32.totalorder %s457, 0
        %s459 = scalar_select %p458, %s457, 0
        %s460 = smul.u32 8, %s28
        %p461 = scmp.lt.s32.totalorder %s27, 1
        %s462 = scalar_select %p461, %s27, 1
        %p463 = scmp.lt.s32.totalorder %s460, 15
        %s464 = scalar_select %p463, %s460, 15
        %s465 = smul.addr %s464, 2
        %s466 = smul.addr %s462, 32
        %s467 = sadd.s32 %s465, %s466
        %s468 = smul.addr %s467, 4
        %s469 = scalar_lea.vmem %s1, %s468
        %s470 = smul.u32 8, %s28
        %s471 = sadd.s32 %s28, 1
        %s472 = smul.u32 %s471, 8
        %p473 = scmp.lt.s32.totalorder %s472, 15
        %s474 = scalar_select %p473, %s472, 15
        %p475 = scmp.lt.s32.totalorder %s27, 1
        %s476 = scalar_select %p475, %s27, 1
        %p477 = scmp.lt.s32.totalorder %s474, 15
        %s478 = scalar_select %p477, %s474, 15
        %s479 = smul.addr %s478, 2
        %s480 = smul.addr %s476, 32
        %s481 = sadd.s32 %s479, %s480
        %s482 = smul.addr %s481, 4
        %s483 = scalar_lea.vmem %s2, %s482
        %s484 = sadd.s32 %s28, 1
        %s485 = smul.u32 %s484, 8
        %p486 = scmp.lt.s32.totalorder %s485, 15
        %s487 = scalar_select %p486, %s485, 15
        %s488 = smul.u32 8, %s28
        %v490 = vlaneseq
        %v491 = vshrl.u32 %v490, 7
        %v492 = vadd.s32 %v491, 8
        %vm493 = vcmp.eq.s32.totalorder %v491, 0
        %vm494 = vcmp.eq.s32.totalorder %v492, 0
        %vm495 = vcmp.eq.s32.totalorder %v491, 15
        %vm496 = vcmp.eq.s32.totalorder %v492, 15
        %v497 = vld [vmem:[%s469] sm:$0xf]
        %v498 = vld [vmem:[%s469 + $0x4] sm:$0xf]
        %v499 = vld [vmem:[%s469 + $0x8] sm:$0xf]
        %v500 = vld [vmem:[%s469 + $0xc] sm:$0xf]
        %v501 = vld [vmem:[%s469 + $0x10] sm:$0xf]
        %v502 = vld [vmem:[%s469 + $0x14] sm:$0xf]
        %v503 = vld [vmem:[%s469 + $0x18] sm:$0xf]
        %v504 = vld [vmem:[%s469 + $0x1c] sm:$0xf]
        %v505 = vld [vmem:[%s469 + $0x20] sm:$0xf]
        %v506 = vld [vmem:[%s469 + $0x24] sm:$0xf]
        %v507 = vld [vmem:[%s469 + $0x28] sm:$0xf]
        %v508 = vld [vmem:[%s469 + $0x2c] sm:$0xf]
        %v509 = vld [vmem:[%s469 + $0x30] sm:$0xf]
        %v510 = vld [vmem:[%s469 + $0x34] sm:$0xf]
        %v511 = vld [vmem:[%s469 + $0x38] sm:$0xf]
        %v512 = vld [vmem:[%s469 + $0x3c] sm:$0xf]
        %v513 = vld [vmem:[%s3] sm:$0xf]
        %v514 = vld [vmem:[%s3 + $0x4] sm:$0xf]
        %v515 = vld [vmem:[%s3 + $0x8] sm:$0xf]
        %v516 = vld [vmem:[%s3 + $0xc] sm:$0xf]
        %v517 = vld [vmem:[%s4] sm:$0x1]
        %v519 = vlaneseq
        %v520 = vshrl.u32 %v519, 7
        %v521 = vsub.s32 0, %v520
        %v522 = vrot.slane %v517, %v521
        %v540 = vunpack.c.l.b16 %v497
        %v541 = vunpack.c.l.b16 %v498
        %v542 = vunpack.c.l.b16 %v499
        %v543 = vunpack.c.l.b16 %v500
        %v544 = vunpack.c.l.b16 %v501
        %v545 = vunpack.c.l.b16 %v502
        %v546 = vunpack.c.l.b16 %v503
        %v547 = vunpack.c.l.b16 %v504
        %v548 = vunpack.c.l.b16 %v505
        %v549 = vunpack.c.l.b16 %v506
        %v550 = vunpack.c.l.b16 %v507
        %v551 = vunpack.c.l.b16 %v508
        %v552 = vunpack.c.l.b16 %v509
        %v553 = vunpack.c.l.b16 %v510
        %v554 = vunpack.c.l.b16 %v511
        %v555 = vunpack.c.l.b16 %v512
        %v556 = vpack.c.b16 %v541, %v540
        %v557 = vpack.c.b16 %v543, %v542
        %v558 = vpack.c.b16 %v545, %v544
        %v559 = vpack.c.b16 %v547, %v546
        %v560 = vpack.c.b16 %v549, %v548
        %v561 = vpack.c.b16 %v551, %v550
        %v562 = vpack.c.b16 %v553, %v552
        %v563 = vpack.c.b16 %v555, %v554
        %v568 = vunpack.c.l.b16 %v513
        %v569 = vunpack.c.l.b16 %v514
        %v570 = vunpack.c.l.b16 %v515
        %v571 = vunpack.c.l.b16 %v516
        %v572 = vpack.c.b16 %v569, %v568
        %v573 = vpack.c.b16 %v571, %v570
        %vm576 = vcmask 261120
        %v578 = vsel %vm576, %v556, 0
        %v581 = vsel %vm576, %v557, 0
        %v584 = vsel %vm576, %v558, 0
        %v587 = vsel %vm576, %v559, 0
        %v590 = vsel %vm576, %v560, 0
        %v593 = vsel %vm576, %v561, 0
        %v596 = vsel %vm576, %v562, 0
        %v599 = vsel %vm576, %v563, 0
        %601 = vmatprep.subr.bf16.mxu0 0
        %602 = vmatpush1.bf16.msra.mxu0 %v572
        %603 = vmatprep.subr.bf16.mxu0 0
        %604 = vmatpush1.bf16.msra.mxu0 %v573
        %605 = vmatprep.subr.bf16.mxu0 0
        %606 = vmatpush1.bf16.msra.mxu0 0
        %607 = vmatprep.subr.bf16.mxu0 0
        %608 = vmatpush1.bf16.msra.mxu0 0
        %609 = vmatprep.subr.bf16.mxu0 0
        %610 = vmatpush1.bf16.msra.mxu0 0
        %611 = vmatprep.subr.bf16.mxu0 0
        %612 = vmatpush1.bf16.msra.mxu0 0
        %613 = vmatprep.subr.bf16.mxu0 0
        %614 = vmatpush1.bf16.msra.mxu0 0
        %615 = vmatprep.subr.bf16.mxu0 0
        %616 = vmatpush1.bf16.msra.mxu0 0
        %617 = vmatprep.subr.bf16.mxu0 0
        %618 = vmatpush1.bf16.msra.mxu0 0
        %619 = vmatprep.subr.bf16.mxu0 0
        %620 = vmatpush1.bf16.msra.mxu0 0
        %621 = vmatprep.subr.bf16.mxu0 0
        %622 = vmatpush1.bf16.msra.mxu0 0
        %623 = vmatprep.subr.bf16.mxu0 0
        %624 = vmatpush1.bf16.msra.mxu0 0
        %625 = vmatprep.subr.bf16.mxu0 0
        %626 = vmatpush1.bf16.msra.mxu0 0
        %627 = vmatprep.subr.bf16.mxu0 0
        %628 = vmatpush1.bf16.msra.mxu0 0
        %629 = vmatprep.subr.bf16.mxu0 0
        %630 = vmatpush1.bf16.msra.mxu0 0
        %631 = vmatprep.subr.bf16.mxu0 0
        %632 = vmatpush1.bf16.msra.mxu0 0
        %633 = vmatprep.mubr.bf16.mxu0 0
        %634 = vmatmul.mubr.bf16.gmra.mrb[0].mxu0 %v578
        %v635 = vpop.f32.mrb[0].mxu0
        %v636 = vadd.f32 %v522, %v635
        %v637 = vpop.f32.mrb[0].mxu0
        %v638 = vpop.f32.mrb[0].mxu0
        %v639 = vadd.f32 %v522, %v638
        %v640 = vpop.f32.mrb[0].mxu0
        %641 = vmatprep.mubr.bf16.mxu0 0
        %642 = vmatmul.mubr.bf16.gmra.mrb[0].mxu0 %v581
        %v643 = vpop.f32.mrb[0].mxu0
        %v644 = vadd.f32 %v522, %v643
        %v645 = vpop.f32.mrb[0].mxu0
        %v646 = vpop.f32.mrb[0].mxu0
        %v647 = vadd.f32 %v522, %v646
        %v648 = vpop.f32.mrb[0].mxu0
        %649 = vmatprep.mubr.bf16.mxu0 0
        %650 = vmatmul.mubr.bf16.gmra.mrb[0].mxu0 %v584
        %v651 = vpop.f32.mrb[0].mxu0
        %v652 = vadd.f32 %v522, %v651
        %v653 = vpop.f32.mrb[0].mxu0
        %v654 = vpop.f32.mrb[0].mxu0
        %v655 = vadd.f32 %v522, %v654
        %v656 = vpop.f32.mrb[0].mxu0
        %657 = vmatprep.mubr.bf16.mxu0 0
        %658 = vmatmul.mubr.bf16.gmra.mrb[0].mxu0 %v587
        %v659 = vpop.f32.mrb[0].mxu0
        %v660 = vadd.f32 %v522, %v659
        %v661 = vpop.f32.mrb[0].mxu0
        %v662 = vpop.f32.mrb[0].mxu0
        %v663 = vadd.f32 %v522, %v662
        %v664 = vpop.f32.mrb[0].mxu0
        %665 = vmatprep.mubr.bf16.mxu0 0
        %666 = vmatmul.mubr.bf16.gmra.mrb[0].mxu0 %v590
        %v667 = vpop.f32.mrb[0].mxu0
        %v668 = vadd.f32 %v522, %v667
        %v669 = vpop.f32.mrb[0].mxu0
        %v670 = vpop.f32.mrb[0].mxu0
        %v671 = vadd.f32 %v522, %v670
        %v672 = vpop.f32.mrb[0].mxu0
        %673 = vmatprep.mubr.bf16.mxu0 0
        %674 = vmatmul.mubr.bf16.gmra.mrb[0].mxu0 %v593
        %v675 = vpop.f32.mrb[0].mxu0
        %v676 = vadd.f32 %v522, %v675
        %v677 = vpop.f32.mrb[0].mxu0
        %v678 = vpop.f32.mrb[0].mxu0
        %v679 = vadd.f32 %v522, %v678
        %v680 = vpop.f32.mrb[0].mxu0
        %681 = vmatprep.mubr.bf16.mxu0 0
        %682 = vmatmul.mubr.bf16.gmra.mrb[0].mxu0 %v596
        %v683 = vpop.f32.mrb[0].mxu0
        %v684 = vadd.f32 %v522, %v683
        %v685 = vpop.f32.mrb[0].mxu0
        %v686 = vpop.f32.mrb[0].mxu0
        %v687 = vadd.f32 %v522, %v686
        %v688 = vpop.f32.mrb[0].mxu0
        %689 = vmatprep.mubr.bf16.mxu0 0
        %690 = vmatmul.mubr.bf16.gmra.mrb[0].mxu0 %v599
        %v691 = vpop.f32.mrb[0].mxu0
        %v692 = vadd.f32 %v522, %v691
        %v693 = vpop.f32.mrb[0].mxu0
        %v694 = vpop.f32.mrb[0].mxu0
        %v695 = vadd.f32 %v522, %v694
        %v696 = vpop.f32.mrb[0].mxu0
        %697 = vdwg.mxu0
        %v698 = vmax.f32 %v636, 0.0
        %v699 = vmax.f32 %v639, 0.0
        %v700 = vmax.f32 %v644, 0.0
        %v701 = vmax.f32 %v647, 0.0
        %v702 = vmax.f32 %v652, 0.0
        %v703 = vmax.f32 %v655, 0.0
        %v704 = vmax.f32 %v660, 0.0
        %v705 = vmax.f32 %v663, 0.0
        %v706 = vmax.f32 %v668, 0.0
        %v707 = vmax.f32 %v671, 0.0
        %v708 = vmax.f32 %v676, 0.0
        %v709 = vmax.f32 %v679, 0.0
        %v710 = vmax.f32 %v684, 0.0
        %v711 = vmax.f32 %v687, 0.0
        %v712 = vmax.f32 %v692, 0.0
        %v713 = vmax.f32 %v695, 0.0
        %v714 = vrot.slane %v698, 7
        %v715 = vrot.slane %v700, 7
        %v716 = vrot.slane %v702, 7
        %v717 = vrot.slane %v704, 7
        %v718 = vrot.slane %v706, 7
        %v719 = vrot.slane %v708, 7
        %v720 = vrot.slane %v710, 7
        %v721 = vrot.slane %v712, 7
        %v722 = vrot.slane %v699, 7
        %v723 = vrot.slane %v701, 7
        %v724 = vrot.slane %v703, 7
        %v725 = vrot.slane %v705, 7
        %v726 = vrot.slane %v707, 7
        %v727 = vrot.slane %v709, 7
        %v728 = vrot.slane %v711, 7
        %v729 = vrot.slane %v713, 7
        %vm730 = vcmp.lt.s32.totalorder %v491, 1
        %v731 = vsel %vm730, %v714, %v722
        %v732 = vsel %vm730, %v715, %v723
        %v733 = vsel %vm730, %v716, %v724
        %v734 = vsel %vm730, %v717, %v725
        %v735 = vsel %vm730, %v718, %v726
        %v736 = vsel %vm730, %v719, %v727
        %v737 = vsel %vm730, %v720, %v728
        %v738 = vsel %vm730, %v721, %v729
        %v739 = vsel %vm730, %v722, %v714
        %v740 = vsel %vm730, %v723, %v715
        %v741 = vsel %vm730, %v724, %v716
        %v742 = vsel %vm730, %v725, %v717
        %v743 = vsel %vm730, %v726, %v718
        %v744 = vsel %vm730, %v727, %v719
        %v745 = vsel %vm730, %v728, %v720
        %v746 = vsel %vm730, %v729, %v721
        %v747 = vsel %vm493, 1, 0
        %v748 = vsel %vm494, 1, 0
        %vm749 = vcmp.eq.s32.totalorder %v747, 1
        %vm750 = vcmp.eq.s32.totalorder %v748, 1
        %v751 = vsel %vm749, 0.0, %v739
        %v752 = vsel %vm750, 0.0, %v731
        %v753 = vsel %vm749, 0.0, %v740
        %v754 = vsel %vm750, 0.0, %v732
        %v755 = vsel %vm749, 0.0, %v741
        %v756 = vsel %vm750, 0.0, %v733
        %v757 = vsel %vm749, 0.0, %v742
        %v758 = vsel %vm750, 0.0, %v734
        %v759 = vsel %vm749, 0.0, %v743
        %v760 = vsel %vm750, 0.0, %v735
        %v761 = vsel %vm749, 0.0, %v744
        %v762 = vsel %vm750, 0.0, %v736
        %v763 = vsel %vm749, 0.0, %v745
        %v764 = vsel %vm750, 0.0, %v737
        %v765 = vsel %vm749, 0.0, %v746
        %v766 = vsel %vm750, 0.0, %v738
        %v767 = vrot.slane %v698, 1
        %v768 = vrot.slane %v700, 1
        %v769 = vrot.slane %v702, 1
        %v770 = vrot.slane %v704, 1
        %v771 = vrot.slane %v706, 1
        %v772 = vrot.slane %v708, 1
        %v773 = vrot.slane %v710, 1
        %v774 = vrot.slane %v712, 1
        %v775 = vrot.slane %v699, 1
        %v776 = vrot.slane %v701, 1
        %v777 = vrot.slane %v703, 1
        %v778 = vrot.slane %v705, 1
        %v779 = vrot.slane %v707, 1
        %v780 = vrot.slane %v709, 1
        %v781 = vrot.slane %v711, 1
        %v782 = vrot.slane %v713, 1
        %vm783 = vcmp.lt.s32.totalorder %v491, 7
        %v784 = vsel %vm783, %v767, %v775
        %v785 = vsel %vm783, %v768, %v776
        %v786 = vsel %vm783, %v769, %v777
        %v787 = vsel %vm783, %v770, %v778
        %v788 = vsel %vm783, %v771, %v779
        %v789 = vsel %vm783, %v772, %v780
        %v790 = vsel %vm783, %v773, %v781
        %v791 = vsel %vm783, %v774, %v782
        %v792 = vsel %vm783, %v775, %v767
        %v793 = vsel %vm783, %v776, %v768
        %v794 = vsel %vm783, %v777, %v769
        %v795 = vsel %vm783, %v778, %v770
        %v796 = vsel %vm783, %v779, %v771
        %v797 = vsel %vm783, %v780, %v772
        %v798 = vsel %vm783, %v781, %v773
        %v799 = vsel %vm783, %v782, %v774
        %v800 = vsel %vm495, 1, 0
        %v801 = vsel %vm496, 1, 0
        %vm802 = vcmp.eq.s32.totalorder %v800, 1
        %vm803 = vcmp.eq.s32.totalorder %v801, 1
        %v804 = vsel %vm802, 0.0, %v784
        %v805 = vsel %vm803, 0.0, %v792
        %v806 = vsel %vm802, 0.0, %v785
        %v807 = vsel %vm803, 0.0, %v793
        %v808 = vsel %vm802, 0.0, %v786
        %v809 = vsel %vm803, 0.0, %v794
        %v810 = vsel %vm802, 0.0, %v787
        %v811 = vsel %vm803, 0.0, %v795
        %v812 = vsel %vm802, 0.0, %v788
        %v813 = vsel %vm803, 0.0, %v796
        %v814 = vsel %vm802, 0.0, %v789
        %v815 = vsel %vm803, 0.0, %v797
        %v816 = vsel %vm802, 0.0, %v790
        %v817 = vsel %vm803, 0.0, %v798
        %v818 = vsel %vm802, 0.0, %v791
        %v819 = vsel %vm803, 0.0, %v799
        %836 = vrot.lane.b32.xlu0 %v698, 8
        %v837 = vpop.permute.xlu0 %836
        %838 = vrot.lane.b32.xlu0 %v699, 8
        %v839 = vpop.permute.xlu0 %838
        %840 = vrot.lane.b32.xlu0 %v700, 8
        %v841 = vpop.permute.xlu0 %840
        %842 = vrot.lane.b32.xlu0 %v701, 8
        %v843 = vpop.permute.xlu0 %842
        %844 = vrot.lane.b32.xlu0 %v702, 8
        %v845 = vpop.permute.xlu0 %844
        %846 = vrot.lane.b32.xlu0 %v703, 8
        %v847 = vpop.permute.xlu0 %846
        %848 = vrot.lane.b32.xlu0 %v704, 8
        %v849 = vpop.permute.xlu0 %848
        %850 = vrot.lane.b32.xlu0 %v705, 8
        %v851 = vpop.permute.xlu0 %850
        %852 = vrot.lane.b32.xlu0 %v706, 8
        %v853 = vpop.permute.xlu0 %852
        %854 = vrot.lane.b32.xlu0 %v707, 8
        %v855 = vpop.permute.xlu0 %854
        %856 = vrot.lane.b32.xlu0 %v708, 8
        %v857 = vpop.permute.xlu0 %856
        %858 = vrot.lane.b32.xlu0 %v709, 8
        %v859 = vpop.permute.xlu0 %858
        %860 = vrot.lane.b32.xlu0 %v710, 8
        %v861 = vpop.permute.xlu0 %860
        %862 = vrot.lane.b32.xlu0 %v711, 8
        %v863 = vpop.permute.xlu0 %862
        %864 = vrot.lane.b32.xlu0 %v712, 8
        %v865 = vpop.permute.xlu0 %864
        %866 = vrot.lane.b32.xlu0 %v713, 8
        %v867 = vpop.permute.xlu0 %866
        %900 = vrot.lane.b32.xlu0 %v804, 16
        %v901 = vpop.permute.xlu0 %900
        %902 = vrot.lane.b32.xlu0 %v805, 16
        %v903 = vpop.permute.xlu0 %902
        %904 = vrot.lane.b32.xlu0 %v806, 16
        %v905 = vpop.permute.xlu0 %904
        %906 = vrot.lane.b32.xlu0 %v807, 16
        %v907 = vpop.permute.xlu0 %906
        %908 = vrot.lane.b32.xlu0 %v808, 16
        %v909 = vpop.permute.xlu0 %908
        %910 = vrot.lane.b32.xlu0 %v809, 16
        %v911 = vpop.permute.xlu0 %910
        %912 = vrot.lane.b32.xlu0 %v810, 16
        %v913 = vpop.permute.xlu0 %912
        %914 = vrot.lane.b32.xlu0 %v811, 16
        %v915 = vpop.permute.xlu0 %914
        %916 = vrot.lane.b32.xlu0 %v812, 16
        %v917 = vpop.permute.xlu0 %916
        %918 = vrot.lane.b32.xlu0 %v813, 16
        %v919 = vpop.permute.xlu0 %918
        %920 = vrot.lane.b32.xlu0 %v814, 16
        %v921 = vpop.permute.xlu0 %920
        %922 = vrot.lane.b32.xlu0 %v815, 16
        %v923 = vpop.permute.xlu0 %922
        %924 = vrot.lane.b32.xlu0 %v816, 16
        %v925 = vpop.permute.xlu0 %924
        %926 = vrot.lane.b32.xlu0 %v817, 16
        %v927 = vpop.permute.xlu0 %926
        %928 = vrot.lane.b32.xlu0 %v818, 16
        %v929 = vpop.permute.xlu0 %928
        %930 = vrot.lane.b32.xlu0 %v819, 16
        %v931 = vpop.permute.xlu0 %930
        %vm948 = vcmask 64512
        %v949 = vsel %vm948, %v751, %v837
        %v950 = vsel %vm948, %v752, %v839
        %v951 = vsel %vm948, %v753, %v841
        %v952 = vsel %vm948, %v754, %v843
        %v953 = vsel %vm948, %v755, %v845
        %v954 = vsel %vm948, %v756, %v847
        %v955 = vsel %vm948, %v757, %v849
        %v956 = vsel %vm948, %v758, %v851
        %v957 = vsel %vm948, %v759, %v853
        %v958 = vsel %vm948, %v760, %v855
        %v959 = vsel %vm948, %v761, %v857
        %v960 = vsel %vm948, %v762, %v859
        %v961 = vsel %vm948, %v763, %v861
        %v962 = vsel %vm948, %v764, %v863
        %v963 = vsel %vm948, %v765, %v865
        %v964 = vsel %vm948, %v766, %v867
        %vm965 = vcmask 130048
        %v966 = vsel %vm965, %v949, %v901
        %v967 = vsel %vm965, %v950, %v903
        %v968 = vsel %vm965, %v951, %v905
        %v969 = vsel %vm965, %v952, %v907
        %v970 = vsel %vm965, %v953, %v909
        %v971 = vsel %vm965, %v954, %v911
        %v972 = vsel %vm965, %v955, %v913
        %v973 = vsel %vm965, %v956, %v915
        %v974 = vsel %vm965, %v957, %v917
        %v975 = vsel %vm965, %v958, %v919
        %v976 = vsel %vm965, %v959, %v921
        %v977 = vsel %vm965, %v960, %v923
        %v978 = vsel %vm965, %v961, %v925
        %v979 = vsel %vm965, %v962, %v927
        %v980 = vsel %vm965, %v963, %v929
        %v981 = vsel %vm965, %v964, %v931
        %v982 = vpack.c.bf16 %v967, %v966
        %v983 = vpack.c.bf16 %v969, %v968
        %v984 = vpack.c.bf16 %v971, %v970
        %v985 = vpack.c.bf16 %v973, %v972
        %v986 = vpack.c.bf16 %v975, %v974
        %v987 = vpack.c.bf16 %v977, %v976
        %v988 = vpack.c.bf16 %v979, %v978
        %v989 = vpack.c.bf16 %v981, %v980
        %s990 = scalar_lea.vmem [#allocation2], 8
        %vm991 = vcmask 195584
        %992 = vst.msk [vmem:[%s990] sm:$0xff] %vm991, %v982
        %993 = vst.msk [vmem:[%s990 + $0x8] sm:$0xff] %vm991, %v983
        %994 = vst.msk [vmem:[%s990 + $0x10] sm:$0xff] %vm991, %v984
        %995 = vst.msk [vmem:[%s990 + $0x18] sm:$0xff] %vm991, %v985
        %996 = vst.msk [vmem:[%s990 + $0x20] sm:$0xff] %vm991, %v986
        %997 = vst.msk [vmem:[%s990 + $0x28] sm:$0xff] %vm991, %v987
        %998 = vst.msk [vmem:[%s990 + $0x30] sm:$0xff] %vm991, %v988
        %999 = vst.msk [vmem:[%s990 + $0x38] sm:$0xff] %vm991, %v989
        %p1000 = scmp.eq.s32.totalorder %s28, 0
        // Predicated region
        $region57: #{bottleneck_forward.1} parent=55 // pred_check
          %p1001 = pneg %p1000
        $region58: #{bottleneck_forward.1} parent=55 // pred_check_branch
          %1003 = sbr.rel (%p1001) target = $region60
        $region59: #{bottleneck_forward.1} parent=55 // pred_region
          %1004 = vst.msk [vmem:[#allocation2] sm:$0xff] %vm991, 0
        $region60: #{bottleneck_forward.1} parent=55 // pred_fallthru
          _
        %p1005 = scmp.ne.s32.totalorder %s28, 0
        // Predicated region
        $region61: #{bottleneck_forward.1} parent=55 // pred_check
          %p1006 = pneg %p1005
        $region62: #{bottleneck_forward.1} parent=55 // pred_check_branch
          %1008 = sbr.rel (%p1006) target = $region64
        $region63: #{bottleneck_forward.1} parent=55 // pred_region
          %v1009 = vld [vmem:[%s455] sm:$0xf]
          %v1010 = vld [vmem:[%s455 + $0x4] sm:$0xf]
          %v1011 = vld [vmem:[%s3] sm:$0xf]
          %v1012 = vld [vmem:[%s3 + $0x4] sm:$0xf]
          %v1013 = vld [vmem:[%s3 + $0x8] sm:$0xf]
          %v1014 = vld [vmem:[%s3 + $0xc] sm:$0xf]
          %v1015 = vld [vmem:[%s4] sm:$0x1]
          %v1017 = vlaneseq
          %v1018 = vshrl.u32 %v1017, 7
          %v1019 = vsub.s32 0, %v1018
          %v1020 = vrot.slane %v1015, %v1019
          %v1024 = vunpack.c.l.b16 %v1009
          %v1025 = vunpack.c.l.b16 %v1010
          %v1026 = vpack.c.b16 %v1025, %v1024
          %v1031 = vunpack.c.l.b16 %v1011
          %v1032 = vunpack.c.l.b16 %v1012
          %v1033 = vunpack.c.l.b16 %v1013
          %v1034 = vunpack.c.l.b16 %v1014
          %v1035 = vpack.c.b16 %v1032, %v1031
          %v1036 = vpack.c.b16 %v1034, %v1033
          %v1040 = vsel %vm576, %v1026, 0
          %1042 = vmatprep.subr.bf16.mxu0 0
          %1043 = vmatpush1.bf16.msra.mxu0 %v1035
          %1044 = vmatprep.subr.bf16.mxu0 0
          %1045 = vmatpush1.bf16.msra.mxu0 %v1036
          %1046 = vmatprep.subr.bf16.mxu0 0
          %1047 = vmatpush1.bf16.msra.mxu0 0
          %1048 = vmatprep.subr.bf16.mxu0 0
          %1049 = vmatpush1.bf16.msra.mxu0 0
          %1050 = vmatprep.subr.bf16.mxu0 0
          %1051 = vmatpush1.bf16.msra.mxu0 0
          %1052 = vmatprep.subr.bf16.mxu0 0
          %1053 = vmatpush1.bf16.msra.mxu0 0
          %1054 = vmatprep.subr.bf16.mxu0 0
          %1055 = vmatpush1.bf16.msra.mxu0 0
          %1056 = vmatprep.subr.bf16.mxu0 0
          %1057 = vmatpush1.bf16.msra.mxu0 0
          %1058 = vmatprep.subr.bf16.mxu0 0
          %1059 = vmatpush1.bf16.msra.mxu0 0
          %1060 = vmatprep.subr.bf16.mxu0 0
          %1061 = vmatpush1.bf16.msra.mxu0 0
          %1062 = vmatprep.subr.bf16.mxu0 0
          %1063 = vmatpush1.bf16.msra.mxu0 0
          %1064 = vmatprep.subr.bf16.mxu0 0
          %1065 = vmatpush1.bf16.msra.mxu0 0
          %1066 = vmatprep.subr.bf16.mxu0 0
          %1067 = vmatpush1.bf16.msra.mxu0 0
          %1068 = vmatprep.subr.bf16.mxu0 0
          %1069 = vmatpush1.bf16.msra.mxu0 0
          %1070 = vmatprep.subr.bf16.mxu0 0
          %1071 = vmatpush1.bf16.msra.mxu0 0
          %1072 = vmatprep.subr.bf16.mxu0 0
          %1073 = vmatpush1.bf16.msra.mxu0 0
          %1074 = vmatprep.mubr.bf16.mxu0 0
          %1075 = vmatmul.mubr.bf16.gmra.mrb[0].mxu0 %v1040
          %v1076 = vpop.f32.mrb[0].mxu0
          %v1077 = vadd.f32 %v1020, %v1076
          %v1078 = vpop.f32.mrb[0].mxu0
          %v1079 = vpop.f32.mrb[0].mxu0
          %v1080 = vadd.f32 %v1020, %v1079
          %v1081 = vpop.f32.mrb[0].mxu0
          %1082 = vdwg.mxu0
          %v1083 = vmax.f32 %v1077, 0.0
          %v1084 = vmax.f32 %v1080, 0.0
          %v1085 = vrot.slane %v1083, 7
          %v1086 = vrot.slane %v1084, 7
          %v1087 = vsel %vm730, %v1085, %v1086
          %v1088 = vsel %vm730, %v1086, %v1085
          %v1089 = vsel %vm749, 0.0, %v1088
          %v1090 = vsel %vm750, 0.0, %v1087
          %v1091 = vrot.slane %v1083, 1
          %v1092 = vrot.slane %v1084, 1
          %v1093 = vsel %vm783, %v1091, %v1092
          %v1094 = vsel %vm783, %v1092, %v1091
          %v1095 = vsel %vm802, 0.0, %v1093
          %v1096 = vsel %vm803, 0.0, %v1094
          %1099 = vrot.lane.b32.xlu0 %v1083, 8
          %v1100 = vpop.permute.xlu0 %1099
          %1101 = vrot.lane.b32.xlu0 %v1084, 8
          %v1102 = vpop.permute.xlu0 %1101
          %1107 = vrot.lane.b32.xlu0 %v1095, 16
          %v1108 = vpop.permute.xlu0 %1107
          %1109 = vrot.lane.b32.xlu0 %v1096, 16
          %v1110 = vpop.permute.xlu0 %1109
          %v1113 = vsel %vm948, %v1089, %v1100
          %v1114 = vsel %vm948, %v1090, %v1102
          %v1115 = vsel %vm965, %v1113, %v1108
          %v1116 = vsel %vm965, %v1114, %v1110
          %v1117 = vpack.c.bf16 %v1116, %v1115
          %1118 = vst.msk [vmem:[#allocation2] sm:$0xff] %vm991, %v1117
        $region64: #{bottleneck_forward.1} parent=55 // pred_fallthru
          _
        %p1119 = scmp.eq.s32.totalorder %s28, 1
        // Predicated region
        $region65: #{bottleneck_forward.1} parent=55 // pred_check
          %p1120 = pneg %p1119
        $region66: #{bottleneck_forward.1} parent=55 // pred_check_branch
          %1122 = sbr.rel (%p1120) target = $region68
        $region67: #{bottleneck_forward.1} parent=55 // pred_region
          %s1123 = scalar_lea.vmem [#allocation2], 72
          %1124 = vst.msk [vmem:[%s1123] sm:$0xff] %vm991, 0
        $region68: #{bottleneck_forward.1} parent=55 // pred_fallthru
          _
        %p1125 = scmp.ne.s32.totalorder %s28, 1
        // Predicated region
        $region69: #{bottleneck_forward.1} parent=55 // pred_check
          %p1126 = pneg %p1125
        $region70: #{bottleneck_forward.1} parent=55 // pred_check_branch
          %1128 = sbr.rel (%p1126) target = $region72
        $region71: #{bottleneck_forward.1} parent=55 // pred_region
          %v1129 = vld [vmem:[%s483] sm:$0xf]
          %v1130 = vld [vmem:[%s483 + $0x4] sm:$0xf]
          %v1131 = vld [vmem:[%s3] sm:$0xf]
          %v1132 = vld [vmem:[%s3 + $0x4] sm:$0xf]
          %v1133 = vld [vmem:[%s3 + $0x8] sm:$0xf]
          %v1134 = vld [vmem:[%s3 + $0xc] sm:$0xf]
          %v1135 = vld [vmem:[%s4] sm:$0x1]
          %v1137 = vlaneseq
          %v1138 = vshrl.u32 %v1137, 7
          %v1139 = vsub.s32 0, %v1138
          %v1140 = vrot.slane %v1135, %v1139
          %v1144 = vunpack.c.l.b16 %v1129
          %v1145 = vunpack.c.l.b16 %v1130
          %v1146 = vpack.c.b16 %v1145, %v1144
          %v1151 = vunpack.c.l.b16 %v1131
          %v1152 = vunpack.c.l.b16 %v1132
          %v1153 = vunpack.c.l.b16 %v1133
          %v1154 = vunpack.c.l.b16 %v1134
          %v1155 = vpack.c.b16 %v1152, %v1151
          %v1156 = vpack.c.b16 %v1154, %v1153
          %v1160 = vsel %vm576, %v1146, 0
          %1162 = vmatprep.subr.bf16.mxu0 0
          %1163 = vmatpush1.bf16.msra.mxu0 %v1155
          %1164 = vmatprep.subr.bf16.mxu0 0
          %1165 = vmatpush1.bf16.msra.mxu0 %v1156
          %1166 = vmatprep.subr.bf16.mxu0 0
          %1167 = vmatpush1.bf16.msra.mxu0 0
          %1168 = vmatprep.subr.bf16.mxu0 0
          %1169 = vmatpush1.bf16.msra.mxu0 0
          %1170 = vmatprep.subr.bf16.mxu0 0
          %1171 = vmatpush1.bf16.msra.mxu0 0
          %1172 = vmatprep.subr.bf16.mxu0 0
          %1173 = vmatpush1.bf16.msra.mxu0 0
          %1174 = vmatprep.subr.bf16.mxu0 0
          %1175 = vmatpush1.bf16.msra.mxu0 0
          %1176 = vmatprep.subr.bf16.mxu0 0
          %1177 = vmatpush1.bf16.msra.mxu0 0
          %1178 = vmatprep.subr.bf16.mxu0 0
          %1179 = vmatpush1.bf16.msra.mxu0 0
          %1180 = vmatprep.subr.bf16.mxu0 0
          %1181 = vmatpush1.bf16.msra.mxu0 0
          %1182 = vmatprep.subr.bf16.mxu0 0
          %1183 = vmatpush1.bf16.msra.mxu0 0
          %1184 = vmatprep.subr.bf16.mxu0 0
          %1185 = vmatpush1.bf16.msra.mxu0 0
          %1186 = vmatprep.subr.bf16.mxu0 0
          %1187 = vmatpush1.bf16.msra.mxu0 0
          %1188 = vmatprep.subr.bf16.mxu0 0
          %1189 = vmatpush1.bf16.msra.mxu0 0
          %1190 = vmatprep.subr.bf16.mxu0 0
          %1191 = vmatpush1.bf16.msra.mxu0 0
          %1192 = vmatprep.subr.bf16.mxu0 0
          %1193 = vmatpush1.bf16.msra.mxu0 0
          %1194 = vmatprep.mubr.bf16.mxu0 0
          %1195 = vmatmul.mubr.bf16.gmra.mrb[0].mxu0 %v1160
          %v1196 = vpop.f32.mrb[0].mxu0
          %v1197 = vadd.f32 %v1140, %v1196
          %v1198 = vpop.f32.mrb[0].mxu0
          %v1199 = vpop.f32.mrb[0].mxu0
          %v1200 = vadd.f32 %v1140, %v1199
          %v1201 = vpop.f32.mrb[0].mxu0
          %1202 = vdwg.mxu0
          %v1203 = vmax.f32 %v1197, 0.0
          %v1204 = vmax.f32 %v1200, 0.0
          %v1205 = vrot.slane %v1203, 7
          %v1206 = vrot.slane %v1204, 7
          %v1207 = vsel %vm730, %v1205, %v1206
          %v1208 = vsel %vm730, %v1206, %v1205
          %v1209 = vsel %vm749, 0.0, %v1208
          %v1210 = vsel %vm750, 0.0, %v1207
          %v1211 = vrot.slane %v1203, 1
          %v1212 = vrot.slane %v1204, 1
          %v1213 = vsel %vm783, %v1211, %v1212
          %v1214 = vsel %vm783, %v1212, %v1211
          %v1215 = vsel %vm802, 0.0, %v1213
          %v1216 = vsel %vm803, 0.0, %v1214
          %1219 = vrot.lane.b32.xlu0 %v1203, 8
          %v1220 = vpop.permute.xlu0 %1219
          %1221 = vrot.lane.b32.xlu0 %v1204, 8
          %v1222 = vpop.permute.xlu0 %1221
          %1227 = vrot.lane.b32.xlu0 %v1215, 16
          %v1228 = vpop.permute.xlu0 %1227
          %1229 = vrot.lane.b32.xlu0 %v1216, 16
          %v1230 = vpop.permute.xlu0 %1229
          %v1233 = vsel %vm948, %v1209, %v1220
          %v1234 = vsel %vm948, %v1210, %v1222
          %v1235 = vsel %vm965, %v1233, %v1228
          %v1236 = vsel %vm965, %v1234, %v1230
          %v1237 = vpack.c.bf16 %v1236, %v1235
          %s1238 = scalar_lea.vmem [#allocation2], 72
          %1239 = vst.msk [vmem:[%s1238] sm:$0xff] %vm991, %v1237
        $region72: #{bottleneck_forward.1} parent=55 // pred_fallthru
          _
        %v1240 = vld [vmem:[#allocation2] sm:$0xff]
        %v1241 = vld [vmem:[#allocation2 + $0x8] sm:$0xff]
        %v1242 = vld [vmem:[#allocation2 + $0x10] sm:$0xff]
        %v1243 = vld [vmem:[#allocation2 + $0x18] sm:$0xff]
        %v1244 = vld [vmem:[#allocation2 + $0x20] sm:$0xff]
        %v1245 = vld [vmem:[#allocation2 + $0x28] sm:$0xff]
        %v1246 = vld [vmem:[#allocation2 + $0x30] sm:$0xff]
        %v1247 = vld [vmem:[#allocation2 + $0x38] sm:$0xff]
        %v1248 = vld [vmem:[%s990] sm:$0xff]
        %v1249 = vld [vmem:[%s990 + $0x8] sm:$0xff]
        %v1250 = vld [vmem:[%s990 + $0x10] sm:$0xff]
        %v1251 = vld [vmem:[%s990 + $0x18] sm:$0xff]
        %v1252 = vld [vmem:[%s990 + $0x20] sm:$0xff]
        %v1253 = vld [vmem:[%s990 + $0x28] sm:$0xff]
        %v1254 = vld [vmem:[%s990 + $0x30] sm:$0xff]
        %v1255 = vld [vmem:[%s990 + $0x38] sm:$0xff]
        %s1256 = scalar_lea.vmem [#allocation2], 16
        %v1257 = vld [vmem:[%s1256] sm:$0xff]
        %v1258 = vld [vmem:[%s1256 + $0x8] sm:$0xff]
        %v1259 = vld [vmem:[%s1256 + $0x10] sm:$0xff]
        %v1260 = vld [vmem:[%s1256 + $0x18] sm:$0xff]
        %v1261 = vld [vmem:[%s1256 + $0x20] sm:$0xff]
        %v1262 = vld [vmem:[%s1256 + $0x28] sm:$0xff]
        %v1263 = vld [vmem:[%s1256 + $0x30] sm:$0xff]
        %v1264 = vld [vmem:[%s1256 + $0x38] sm:$0xff]
        %1273 = vrot.lane.b32.xlu0 %v1248, 24
        %v1274 = vpop.permute.xlu0 %1273
        %1275 = vrot.lane.b32.xlu0 %v1249, 24
        %v1276 = vpop.permute.xlu0 %1275
        %1277 = vrot.lane.b32.xlu0 %v1250, 24
        %v1278 = vpop.permute.xlu0 %1277
        %1279 = vrot.lane.b32.xlu0 %v1251, 24
        %v1280 = vpop.permute.xlu0 %1279
        %1281 = vrot.lane.b32.xlu0 %v1252, 24
        %v1282 = vpop.permute.xlu0 %1281
        %1283 = vrot.lane.b32.xlu0 %v1253, 24
        %v1284 = vpop.permute.xlu0 %1283
        %1285 = vrot.lane.b32.xlu0 %v1254, 24
        %v1286 = vpop.permute.xlu0 %1285
        %1287 = vrot.lane.b32.xlu0 %v1255, 24
        %v1288 = vpop.permute.xlu0 %1287
        %1297 = vrot.lane.b32.xlu0 %v1257, 48
        %v1298 = vpop.permute.xlu0 %1297
        %1299 = vrot.lane.b32.xlu0 %v1258, 48
        %v1300 = vpop.permute.xlu0 %1299
        %1301 = vrot.lane.b32.xlu0 %v1259, 48
        %v1302 = vpop.permute.xlu0 %1301
        %1303 = vrot.lane.b32.xlu0 %v1260, 48
        %v1304 = vpop.permute.xlu0 %1303
        %1305 = vrot.lane.b32.xlu0 %v1261, 48
        %v1306 = vpop.permute.xlu0 %1305
        %1307 = vrot.lane.b32.xlu0 %v1262, 48
        %v1308 = vpop.permute.xlu0 %1307
        %1309 = vrot.lane.b32.xlu0 %v1263, 48
        %v1310 = vpop.permute.xlu0 %1309
        %1311 = vrot.lane.b32.xlu0 %v1264, 48
        %v1312 = vpop.permute.xlu0 %1311
        %v1315 = vsel %vm991, %v1240, %v1274
        %v1318 = vsel %vm991, %v1241, %v1276
        %v1321 = vsel %vm991, %v1242, %v1278
        %v1324 = vsel %vm991, %v1243, %v1280
        %v1327 = vsel %vm991, %v1244, %v1282
        %v1330 = vsel %vm991, %v1245, %v1284
        %v1333 = vsel %vm991, %v1246, %v1286
        %v1336 = vsel %vm991, %v1247, %v1288
        %vm1337 = vcmask 392192
        %v1339 = vsel %vm1337, %v1315, %v1298
        %v1341 = vsel %vm1337, %v1318, %v1300
        %v1343 = vsel %vm1337, %v1321, %v1302
        %v1345 = vsel %vm1337, %v1324, %v1304
        %v1347 = vsel %vm1337, %v1327, %v1306
        %v1349 = vsel %vm1337, %v1330, %v1308
        %v1351 = vsel %vm1337, %v1333, %v1310
        %v1353 = vsel %vm1337, %v1336, %v1312
        %v1354 = vld [vmem:[%s5] sm:$0xf]
        %v1355 = vld [vmem:[%s5 + $0x4] sm:$0xf]
        %v1356 = vld [vmem:[%s5 + $0x8] sm:$0xf]
        %v1357 = vld [vmem:[%s5 + $0xc] sm:$0xf]
        %v1358 = vld [vmem:[%s5 + $0x10] sm:$0xf]
        %v1359 = vld [vmem:[%s5 + $0x14] sm:$0xf]
        %v1360 = vld [vmem:[%s5 + $0x18] sm:$0xf]
        %v1361 = vld [vmem:[%s5 + $0x1c] sm:$0xf]
        %v1362 = vld [vmem:[%s5 + $0x20] sm:$0xf]
        %v1363 = vld [vmem:[%s6] sm:$0x1]
        %v1365 = vlaneseq
        %v1366 = vshrl.u32 %v1365, 7
        %v1367 = vsub.s32 0, %v1366
        %v1368 = vrot.slane %v1363, %v1367
        %v1379 = vunpack.c.l.b16 %v1354
        %v1380 = vunpack.c.l.b16 %v1355
        %v1381 = vunpack.c.l.b16 %v1356
        %v1382 = vunpack.c.l.b16 %v1357
        %v1383 = vunpack.c.l.b16 %v1358
        %v1384 = vunpack.c.l.b16 %v1359
        %v1385 = vunpack.c.l.b16 %v1360
        %v1386 = vunpack.c.l.b16 %v1361
        %v1387 = vunpack.c.l.b16 %v1362
        %v1388 = vpack.c.b16 %v1380, %v1379
        %v1389 = vpack.c.b16 %v1382, %v1381
        %v1390 = vpack.c.b16 %v1384, %v1383
        %v1391 = vpack.c.b16 %v1386, %v1385
        %v1392 = vpack.c.b16 %v1387, %v1387
        %vm1397 = vcmask 588800
        %v1398 = vsel %vm1397, %v1339, 0
        %v1400 = vsel %vm1397, %v1341, 0
        %v1402 = vsel %vm1397, %v1343, 0
        %v1404 = vsel %vm1397, %v1345, 0
        %v1406 = vsel %vm1397, %v1347, 0
        %v1408 = vsel %vm1397, %v1349, 0
        %v1410 = vsel %vm1397, %v1351, 0
        %v1412 = vsel %vm1397, %v1353, 0
        %vm1414 = vcmask 1043456
        %v1416 = vsel %vm1414, %v1392, 0
        %1418 = vmatprep.subr.bf16.mxu0 0
        %1419 = vmatpush1.bf16.msra.mxu0 %v1388
        %1420 = vmatprep.subr.bf16.mxu0 0
        %1421 = vmatpush1.bf16.msra.mxu0 %v1389
        %1422 = vmatprep.subr.bf16.mxu0 0
        %1423 = vmatpush1.bf16.msra.mxu0 %v1390
        %1424 = vmatprep.subr.bf16.mxu0 0
        %1425 = vmatpush1.bf16.msra.mxu0 %v1391
        %1426 = vmatprep.subr.bf16.mxu0 0
        %1427 = vmatpush1.bf16.msra.mxu0 %v1416
        %1428 = vmatprep.subr.bf16.mxu0 0
        %1429 = vmatpush1.bf16.msra.mxu0 0
        %1430 = vmatprep.subr.bf16.mxu0 0
        %1431 = vmatpush1.bf16.msra.mxu0 0
        %1432 = vmatprep.subr.bf16.mxu0 0
        %1433 = vmatpush1.bf16.msra.mxu0 0
        %1434 = vmatprep.subr.bf16.mxu0 0
        %1435 = vmatpush1.bf16.msra.mxu0 0
        %1436 = vmatprep.subr.bf16.mxu0 0
        %1437 = vmatpush1.bf16.msra.mxu0 0
        %1438 = vmatprep.subr.bf16.mxu0 0
        %1439 = vmatpush1.bf16.msra.mxu0 0
        %1440 = vmatprep.subr.bf16.mxu0 0
        %1441 = vmatpush1.bf16.msra.mxu0 0
        %1442 = vmatprep.subr.bf16.mxu0 0
        %1443 = vmatpush1.bf16.msra.mxu0 0
        %1444 = vmatprep.subr.bf16.mxu0 0
        %1445 = vmatpush1.bf16.msra.mxu0 0
        %1446 = vmatprep.subr.bf16.mxu0 0
        %1447 = vmatpush1.bf16.msra.mxu0 0
        %1448 = vmatprep.subr.bf16.mxu0 0
        %1449 = vmatpush1.bf16.msra.mxu0 0
        %1450 = vmatprep.mubr.bf16.mxu0 0
        %1451 = vmatmul.mubr.bf16.gmra.mrb[0].mxu0 %v1398
        %v1452 = vpop.f32.mrb[0].mxu0
        %v1453 = vadd.f32 %v1368, %v1452
        %v1454 = vpop.f32.mrb[0].mxu0
        %v1455 = vpop.f32.mrb[0].mxu0
        %v1456 = vadd.f32 %v1368, %v1455
        %v1457 = vpop.f32.mrb[0].mxu0
        %1458 = vmatprep.mubr.bf16.mxu0 0
        %1459 = vmatmul.mubr.bf16.gmra.mrb[0].mxu0 %v1400
        %v1460 = vpop.f32.mrb[0].mxu0
        %v1461 = vadd.f32 %v1368, %v1460
        %v1462 = vpop.f32.mrb[0].mxu0
        %v1463 = vpop.f32.mrb[0].mxu0
        %v1464 = vadd.f32 %v1368, %v1463
        %v1465 = vpop.f32.mrb[0].mxu0
        %1466 = vmatprep.mubr.bf16.mxu0 0
        %1467 = vmatmul.mubr.bf16.gmra.mrb[0].mxu0 %v1402
        %v1468 = vpop.f32.mrb[0].mxu0
        %v1469 = vadd.f32 %v1368, %v1468
        %v1470 = vpop.f32.mrb[0].mxu0
        %v1471 = vpop.f32.mrb[0].mxu0
        %v1472 = vadd.f32 %v1368, %v1471
        %v1473 = vpop.f32.mrb[0].mxu0
        %1474 = vmatprep.mubr.bf16.mxu0 0
        %1475 = vmatmul.mubr.bf16.gmra.mrb[0].mxu0 %v1404
        %v1476 = vpop.f32.mrb[0].mxu0
        %v1477 = vadd.f32 %v1368, %v1476
        %v1478 = vpop.f32.mrb[0].mxu0
        %v1479 = vpop.f32.mrb[0].mxu0
        %v1480 = vadd.f32 %v1368, %v1479
        %v1481 = vpop.f32.mrb[0].mxu0
        %1482 = vmatprep.mubr.bf16.mxu0 0
        %1483 = vmatmul.mubr.bf16.gmra.mrb[0].mxu0 %v1406
        %v1484 = vpop.f32.mrb[0].mxu0
        %v1485 = vadd.f32 %v1368, %v1484
        %v1486 = vpop.f32.mrb[0].mxu0
        %v1487 = vpop.f32.mrb[0].mxu0
        %v1488 = vadd.f32 %v1368, %v1487
        %v1489 = vpop.f32.mrb[0].mxu0
        %1490 = vmatprep.mubr.bf16.mxu0 0
        %1491 = vmatmul.mubr.bf16.gmra.mrb[0].mxu0 %v1408
        %v1492 = vpop.f32.mrb[0].mxu0
        %v1493 = vadd.f32 %v1368, %v1492
        %v1494 = vpop.f32.mrb[0].mxu0
        %v1495 = vpop.f32.mrb[0].mxu0
        %v1496 = vadd.f32 %v1368, %v1495
        %v1497 = vpop.f32.mrb[0].mxu0
        %1498 = vmatprep.mubr.bf16.mxu0 0
        %1499 = vmatmul.mubr.bf16.gmra.mrb[0].mxu0 %v1410
        %v1500 = vpop.f32.mrb[0].mxu0
        %v1501 = vadd.f32 %v1368, %v1500
        %v1502 = vpop.f32.mrb[0].mxu0
        %v1503 = vpop.f32.mrb[0].mxu0
        %v1504 = vadd.f32 %v1368, %v1503
        %v1505 = vpop.f32.mrb[0].mxu0
        %1506 = vmatprep.mubr.bf16.mxu0 0
        %1507 = vmatmul.mubr.bf16.gmra.mrb[0].mxu0 %v1412
        %v1508 = vpop.f32.mrb[0].mxu0
        %v1509 = vadd.f32 %v1368, %v1508
        %v1510 = vpop.f32.mrb[0].mxu0
        %v1511 = vpop.f32.mrb[0].mxu0
        %v1512 = vadd.f32 %v1368, %v1511
        %v1513 = vpop.f32.mrb[0].mxu0
        %1514 = vdwg.mxu0
        %v1515 = vmax.f32 %v1453, 0.0
        %v1516 = vmax.f32 %v1456, 0.0
        %v1517 = vmax.f32 %v1461, 0.0
        %v1518 = vmax.f32 %v1464, 0.0
        %v1519 = vmax.f32 %v1469, 0.0
        %v1520 = vmax.f32 %v1472, 0.0
        %v1521 = vmax.f32 %v1477, 0.0
        %v1522 = vmax.f32 %v1480, 0.0
        %v1523 = vmax.f32 %v1485, 0.0
        %v1524 = vmax.f32 %v1488, 0.0
        %v1525 = vmax.f32 %v1493, 0.0
        %v1526 = vmax.f32 %v1496, 0.0
        %v1527 = vmax.f32 %v1501, 0.0
        %v1528 = vmax.f32 %v1504, 0.0
        %v1529 = vmax.f32 %v1509, 0.0
        %v1530 = vmax.f32 %v1512, 0.0
        %v1531 = vpack.c.bf16 %v1516, %v1515
        %v1532 = vpack.c.bf16 %v1518, %v1517
        %v1533 = vpack.c.bf16 %v1520, %v1519
        %v1534 = vpack.c.bf16 %v1522, %v1521
        %v1535 = vpack.c.bf16 %v1524, %v1523
        %v1536 = vpack.c.bf16 %v1526, %v1525
        %v1537 = vpack.c.bf16 %v1528, %v1527
        %v1538 = vpack.c.bf16 %v1530, %v1529
        %v1539 = vld [vmem:[%s7] sm:$0xf]
        %v1540 = vld [vmem:[%s8] sm:$0x1]
        %v1542 = vlaneseq
        %v1543 = vshrl.u32 %v1542, 7
        %v1544 = vsub.s32 0, %v1543
        %v1545 = vrot.slane %v1540, %v1544
        %v1548 = vsel %vm948, %v1531, 0
        %v1551 = vsel %vm948, %v1532, 0
        %v1554 = vsel %vm948, %v1533, 0
        %v1557 = vsel %vm948, %v1534, 0
        %v1560 = vsel %vm948, %v1535, 0
        %v1563 = vsel %vm948, %v1536, 0
        %v1566 = vsel %vm948, %v1537, 0
        %v1569 = vsel %vm948, %v1538, 0
        %v1572 = vsel %vm1414, %v1539, 0
        %1574 = vmatprep.subr.bf16.mxu0 0
        %1575 = vmatpush1.bf16.msra.mxu0 %v1572
        %1576 = vmatprep.subr.bf16.mxu0 0
        %1577 = vmatpush1.bf16.msra.mxu0 0
        %1578 = vmatprep.subr.bf16.mxu0 0
        %1579 = vmatpush1.bf16.msra.mxu0 0
        %1580 = vmatprep.subr.bf16.mxu0 0
        %1581 = vmatpush1.bf16.msra.mxu0 0
        %1582 = vmatprep.subr.bf16.mxu0 0
        %1583 = vmatpush1.bf16.msra.mxu0 0
        %1584 = vmatprep.subr.bf16.mxu0 0
        %1585 = vmatpush1.bf16.msra.mxu0 0
        %1586 = vmatprep.subr.bf16.mxu0 0
        %1587 = vmatpush1.bf16.msra.mxu0 0
        %1588 = vmatprep.subr.bf16.mxu0 0
        %1589 = vmatpush1.bf16.msra.mxu0 0
        %1590 = vmatprep.subr.bf16.mxu0 0
        %1591 = vmatpush1.bf16.msra.mxu0 0
        %1592 = vmatprep.subr.bf16.mxu0 0
        %1593 = vmatpush1.bf16.msra.mxu0 0
        %1594 = vmatprep.subr.bf16.mxu0 0
        %1595 = vmatpush1.bf16.msra.mxu0 0
        %1596 = vmatprep.subr.bf16.mxu0 0
        %1597 = vmatpush1.bf16.msra.mxu0 0
        %1598 = vmatprep.subr.bf16.mxu0 0
        %1599 = vmatpush1.bf16.msra.mxu0 0
        %1600 = vmatprep.subr.bf16.mxu0 0
        %1601 = vmatpush1.bf16.msra.mxu0 0
        %1602 = vmatprep.subr.bf16.mxu0 0
        %1603 = vmatpush1.bf16.msra.mxu0 0
        %1604 = vmatprep.subr.bf16.mxu0 0
        %1605 = vmatpush1.bf16.msra.mxu0 0
        %1606 = vmatprep.mubr.bf16.mxu0 0
        %1607 = vmatmul.mubr.bf16.gmra.mrb[0].mxu0 %v1548
        %v1608 = vpop.f32.mrb[0].mxu0
        %v1609 = vadd.f32 %v1545, %v1608
        %v1610 = vpop.f32.mrb[0].mxu0
        %v1611 = vpop.f32.mrb[0].mxu0
        %v1612 = vadd.f32 %v1545, %v1611
        %v1613 = vpop.f32.mrb[0].mxu0
        %1614 = vmatprep.mubr.bf16.mxu0 0
        %1615 = vmatmul.mubr.bf16.gmra.mrb[0].mxu0 %v1551
        %v1616 = vpop.f32.mrb[0].mxu0
        %v1617 = vadd.f32 %v1545, %v1616
        %v1618 = vpop.f32.mrb[0].mxu0
        %v1619 = vpop.f32.mrb[0].mxu0
        %v1620 = vadd.f32 %v1545, %v1619
        %v1621 = vpop.f32.mrb[0].mxu0
        %1622 = vmatprep.mubr.bf16.mxu0 0
        %1623 = vmatmul.mubr.bf16.gmra.mrb[0].mxu0 %v1554
        %v1624 = vpop.f32.mrb[0].mxu0
        %v1625 = vadd.f32 %v1545, %v1624
        %v1626 = vpop.f32.mrb[0].mxu0
        %v1627 = vpop.f32.mrb[0].mxu0
        %v1628 = vadd.f32 %v1545, %v1627
        %v1629 = vpop.f32.mrb[0].mxu0
        %1630 = vmatprep.mubr.bf16.mxu0 0
        %1631 = vmatmul.mubr.bf16.gmra.mrb[0].mxu0 %v1557
        %v1632 = vpop.f32.mrb[0].mxu0
        %v1633 = vadd.f32 %v1545, %v1632
        %v1634 = vpop.f32.mrb[0].mxu0
        %v1635 = vpop.f32.mrb[0].mxu0
        %v1636 = vadd.f32 %v1545, %v1635
        %v1637 = vpop.f32.mrb[0].mxu0
        %1638 = vmatprep.mubr.bf16.mxu0 0
        %1639 = vmatmul.mubr.bf16.gmra.mrb[0].mxu0 %v1560
        %v1640 = vpop.f32.mrb[0].mxu0
        %v1641 = vadd.f32 %v1545, %v1640
        %v1642 = vpop.f32.mrb[0].mxu0
        %v1643 = vpop.f32.mrb[0].mxu0
        %v1644 = vadd.f32 %v1545, %v1643
        %v1645 = vpop.f32.mrb[0].mxu0
        %1646 = vmatprep.mubr.bf16.mxu0 0
        %1647 = vmatmul.mubr.bf16.gmra.mrb[0].mxu0 %v1563
        %v1648 = vpop.f32.mrb[0].mxu0
        %v1649 = vadd.f32 %v1545, %v1648
        %v1650 = vpop.f32.mrb[0].mxu0
        %v1651 = vpop.f32.mrb[0].mxu0
        %v1652 = vadd.f32 %v1545, %v1651
        %v1653 = vpop.f32.mrb[0].mxu0
        %1654 = vmatprep.mubr.bf16.mxu0 0
        %1655 = vmatmul.mubr.bf16.gmra.mrb[0].mxu0 %v1566
        %v1656 = vpop.f32.mrb[0].mxu0
        %v1657 = vadd.f32 %v1545, %v1656
        %v1658 = vpop.f32.mrb[0].mxu0
        %v1659 = vpop.f32.mrb[0].mxu0
        %v1660 = vadd.f32 %v1545, %v1659
        %v1661 = vpop.f32.mrb[0].mxu0
        %1662 = vmatprep.mubr.bf16.mxu0 0
        %1663 = vmatmul.mubr.bf16.gmra.mrb[0].mxu0 %v1569
        %v1664 = vpop.f32.mrb[0].mxu0
        %v1665 = vadd.f32 %v1545, %v1664
        %v1666 = vpop.f32.mrb[0].mxu0
        %v1667 = vpop.f32.mrb[0].mxu0
        %v1668 = vadd.f32 %v1545, %v1667
        %v1669 = vpop.f32.mrb[0].mxu0
        %1670 = vdwg.mxu0
        %v1671 = vld [vmem:[%s469] sm:$0xf]
        %v1672 = vld [vmem:[%s469 + $0x4] sm:$0xf]
        %v1673 = vld [vmem:[%s469 + $0x8] sm:$0xf]
        %v1674 = vld [vmem:[%s469 + $0xc] sm:$0xf]
        %v1675 = vld [vmem:[%s469 + $0x10] sm:$0xf]
        %v1676 = vld [vmem:[%s469 + $0x14] sm:$0xf]
        %v1677 = vld [vmem:[%s469 + $0x18] sm:$0xf]
        %v1678 = vld [vmem:[%s469 + $0x1c] sm:$0xf]
        %v1679 = vld [vmem:[%s469 + $0x20] sm:$0xf]
        %v1680 = vld [vmem:[%s469 + $0x24] sm:$0xf]
        %v1681 = vld [vmem:[%s469 + $0x28] sm:$0xf]
        %v1682 = vld [vmem:[%s469 + $0x2c] sm:$0xf]
        %v1683 = vld [vmem:[%s469 + $0x30] sm:$0xf]
        %v1684 = vld [vmem:[%s469 + $0x34] sm:$0xf]
        %v1685 = vld [vmem:[%s469 + $0x38] sm:$0xf]
        %v1686 = vld [vmem:[%s469 + $0x3c] sm:$0xf]
        %v1687 = vunpack.c.l.bf16 %v1671
        %v1688 = vunpack.c.l.bf16 %v1672
        %v1689 = vunpack.c.l.bf16 %v1673
        %v1690 = vunpack.c.l.bf16 %v1674
        %v1691 = vunpack.c.l.bf16 %v1675
        %v1692 = vunpack.c.l.bf16 %v1676
        %v1693 = vunpack.c.l.bf16 %v1677
        %v1694 = vunpack.c.l.bf16 %v1678
        %v1695 = vunpack.c.l.bf16 %v1679
        %v1696 = vunpack.c.l.bf16 %v1680
        %v1697 = vunpack.c.l.bf16 %v1681
        %v1698 = vunpack.c.l.bf16 %v1682
        %v1699 = vunpack.c.l.bf16 %v1683
        %v1700 = vunpack.c.l.bf16 %v1684
        %v1701 = vunpack.c.l.bf16 %v1685
        %v1702 = vunpack.c.l.bf16 %v1686
        %v1703 = vadd.f32 %v1609, %v1687
        %v1704 = vadd.f32 %v1612, %v1688
        %v1705 = vadd.f32 %v1617, %v1689
        %v1706 = vadd.f32 %v1620, %v1690
        %v1707 = vadd.f32 %v1625, %v1691
        %v1708 = vadd.f32 %v1628, %v1692
        %v1709 = vadd.f32 %v1633, %v1693
        %v1710 = vadd.f32 %v1636, %v1694
        %v1711 = vadd.f32 %v1641, %v1695
        %v1712 = vadd.f32 %v1644, %v1696
        %v1713 = vadd.f32 %v1649, %v1697
        %v1714 = vadd.f32 %v1652, %v1698
        %v1715 = vadd.f32 %v1657, %v1699
        %v1716 = vadd.f32 %v1660, %v1700
        %v1717 = vadd.f32 %v1665, %v1701
        %v1718 = vadd.f32 %v1668, %v1702
        %v1719 = vmax.f32 %v1703, 0.0
        %v1720 = vmax.f32 %v1704, 0.0
        %v1721 = vmax.f32 %v1705, 0.0
        %v1722 = vmax.f32 %v1706, 0.0
        %v1723 = vmax.f32 %v1707, 0.0
        %v1724 = vmax.f32 %v1708, 0.0
        %v1725 = vmax.f32 %v1709, 0.0
        %v1726 = vmax.f32 %v1710, 0.0
        %v1727 = vmax.f32 %v1711, 0.0
        %v1728 = vmax.f32 %v1712, 0.0
        %v1729 = vmax.f32 %v1713, 0.0
        %v1730 = vmax.f32 %v1714, 0.0
        %v1731 = vmax.f32 %v1715, 0.0
        %v1732 = vmax.f32 %v1716, 0.0
        %v1733 = vmax.f32 %v1717, 0.0
        %v1734 = vmax.f32 %v1718, 0.0
        %v1735 = vpack.c.bf16 %v1720, %v1719
        %v1736 = vpack.c.bf16 %v1722, %v1721
        %v1737 = vpack.c.bf16 %v1724, %v1723
        %v1738 = vpack.c.bf16 %v1726, %v1725
        %v1739 = vpack.c.bf16 %v1728, %v1727
        %v1740 = vpack.c.bf16 %v1730, %v1729
        %v1741 = vpack.c.bf16 %v1732, %v1731
        %v1742 = vpack.c.bf16 %v1734, %v1733
        %v1751 = vunpack.c.l.b16 %v1735
        %v1752 = vunpack.c.h.b16 %v1735
        %v1753 = vunpack.c.l.b16 %v1736
        %v1754 = vunpack.c.h.b16 %v1736
        %v1755 = vunpack.c.l.b16 %v1737
        %v1756 = vunpack.c.h.b16 %v1737
        %v1757 = vunpack.c.l.b16 %v1738
        %v1758 = vunpack.c.h.b16 %v1738
        %v1759 = vunpack.c.l.b16 %v1739
        %v1760 = vunpack.c.h.b16 %v1739
        %v1761 = vunpack.c.l.b16 %v1740
        %v1762 = vunpack.c.h.b16 %v1740
        %v1763 = vunpack.c.l.b16 %v1741
        %v1764 = vunpack.c.h.b16 %v1741
        %v1765 = vunpack.c.l.b16 %v1742
        %v1766 = vunpack.c.h.b16 %v1742
        %v1767 = vpack.c.b16 %v1751, %v1751
        %v1768 = vpack.c.b16 %v1752, %v1752
        %v1769 = vpack.c.b16 %v1753, %v1753
        %v1770 = vpack.c.b16 %v1754, %v1754
        %v1771 = vpack.c.b16 %v1755, %v1755
        %v1772 = vpack.c.b16 %v1756, %v1756
        %v1773 = vpack.c.b16 %v1757, %v1757
        %v1774 = vpack.c.b16 %v1758, %v1758
        %v1775 = vpack.c.b16 %v1759, %v1759
        %v1776 = vpack.c.b16 %v1760, %v1760
        %v1777 = vpack.c.b16 %v1761, %v1761
        %v1778 = vpack.c.b16 %v1762, %v1762
        %v1779 = vpack.c.b16 %v1763, %v1763
        %v1780 = vpack.c.b16 %v1764, %v1764
        %v1781 = vpack.c.b16 %v1765, %v1765
        %v1782 = vpack.c.b16 %v1766, %v1766
        %vm1799 = vcmask 257024
        %1800 = vst.msk [vmem:[%s442] sm:$0xf] %vm1799, %v1767
        %1801 = vst.msk [vmem:[%s442 + $0x4] sm:$0xf] %vm1799, %v1768
        %1802 = vst.msk [vmem:[%s442 + $0x8] sm:$0xf] %vm1799, %v1769
        %1803 = vst.msk [vmem:[%s442 + $0xc] sm:$0xf] %vm1799, %v1770
        %1804 = vst.msk [vmem:[%s442 + $0x10] sm:$0xf] %vm1799, %v1771
        %1805 = vst.msk [vmem:[%s442 + $0x14] sm:$0xf] %vm1799, %v1772
        %1806 = vst.msk [vmem:[%s442 + $0x18] sm:$0xf] %vm1799, %v1773
        %1807 = vst.msk [vmem:[%s442 + $0x1c] sm:$0xf] %vm1799, %v1774
        %1808 = vst.msk [vmem:[%s442 + $0x20] sm:$0xf] %vm1799, %v1775
        %1809 = vst.msk [vmem:[%s442 + $0x24] sm:$0xf] %vm1799, %v1776
        %1810 = vst.msk [vmem:[%s442 + $0x28] sm:$0xf] %vm1799, %v1777
        %1811 = vst.msk [vmem:[%s442 + $0x2c] sm:$0xf] %vm1799, %v1778
        %1812 = vst.msk [vmem:[%s442 + $0x30] sm:$0xf] %vm1799, %v1779
        %1813 = vst.msk [vmem:[%s442 + $0x34] sm:$0xf] %vm1799, %v1780
        %1814 = vst.msk [vmem:[%s442 + $0x38] sm:$0xf] %vm1799, %v1781
        %1815 = vst.msk [vmem:[%s442 + $0x3c] sm:$0xf] %vm1799, %v1782
        %s1816 = sand.u32 %s271, 1
        %s1817 = scalar_lea.sflag [#allocation4], %s1816
        %s1818 = sand.u32 %s271, 1
        %s1819 = smul.addr %s1818, 64
        %s1820 = scalar_lea.vmem [#allocation3], %s1819
        // Predicated region
        $region73: #{bottleneck_forward.1} parent=55 // pred_check
          %p1821 = pneg %p281
        $region74: #{bottleneck_forward.1} parent=55 // pred_check_branch
          %1823 = sbr.rel (%p1821) target = $region76
        $region75: #{bottleneck_forward.1} parent=55 // pred_region
          %s1824 = smul.u32 8, %s28
          %s1826 = ssub.s32 1024, 1024
          %1827 = vsyncadd %s1817, %s1826
          %s1828 = smul.addr %s1824, 2
          %s1829 = smul.addr %s27, 32
          %s1830 = sadd.s32 %s1828, %s1829
          %s1831 = smul.addr %s1830, 64
          %s1832 = scalar_lea.hbm %s9, %s1831
          %s1833 = sshll.u32 %s1820, 4
          %s1834 = int_to_ptr.vmem [resolvable:$true] %s1833
          %1839 = dma.vmem_to_hbm [thread:$0]  %s1834, 1024, %s1832, %s1817, 64, 64, 4
        $region76: #{bottleneck_forward.1} parent=55 // pred_fallthru
          _
      $region56: #{bottleneck_forward.1} parent=5 // pred_fallthru
        _
      %p1840 = scmp.le.s32.totalorder 2, %s18
      // Predicated region
      $region77: #{bottleneck_forward.1} parent=5 // pred_check
        %p1841 = pneg %p1840
      $region78: #{bottleneck_forward.1} parent=5 // pred_check_branch
        %1843 = sbr.rel (%p1841) target = $region80
      $region79: #{bottleneck_forward.1} parent=5 // pred_region
        %s1844 = ssub.s32 %s18, 2
        // Predicated region
        $region81: #{bottleneck_forward.1} parent=79 // pred_check
          %p1845 = pneg %p287
        $region82: #{bottleneck_forward.1} parent=79 // pred_check_branch
          %1847 = sbr.rel (%p1845) target = $region84
        $region83: #{bottleneck_forward.1} parent=79 // pred_region
          %s1848 = sand.u32 %s272, 1
          %s1849 = scalar_lea.sflag [#allocation4], %s1848
          %s1850 = sand.u32 %s272, 1
          %s1851 = smul.addr %s1850, 64
          %s1852 = scalar_lea.vmem [#allocation3], %s1851
          %1853 = dma.done %s1849, 1024
        $region84: #{bottleneck_forward.1} parent=79 // pred_fallthru
          _
      $region80: #{bottleneck_forward.1} parent=5 // pred_fallthru
        _
    $region6: #{bottleneck_forward.1} parent=1 // loop_footer
      %s22 = sadd.s32 1, %s18
    $region7: #{bottleneck_forward.1} parent=1 // loop_footer_branch
      %17 = sbr.rel target = $region3
    $region8: #{bottleneck_forward.1} parent=1 // loop_exit
      _
    %1854 = vsyncpa [#allocation4], 1
    %s1855 = scalar_lea.sflag [#allocation4], 1
    %1856 = vsyncpa %s1855, 1

</llo_original>
